<compile_context>
chip_gen: v7x
topology: tpu7x:2x2x1
jax: 0.10.0
libtpu: 0.0.40
codegen_flags: <defaults>
</compile_context>

<pallas_src>
import functools

import jax
import jax.numpy as jnp
from jax.experimental import pallas as pl
from jax.experimental.pallas import tpu as pltpu

BN_EPS = 1e-5
PAD = 128          # lane-padded feature width (all layer dims <= 128 here)
HALF = PAD // 2


def layer_config(D_in, H=50, H2=12, latent_dim=3):
    """The 11 torch layers: (d_in, d_out, has_bn)."""
    L = latent_dim
    return [
        (D_in, H, True),   # 0  linear1 / lin_bn1
        (H, H2, True),     # 1  linear2 / lin_bn2
        (H2, H2, True),    # 2  linear3 / lin_bn3
        (H2, L, True),     # 3  fc1 / bn1
        (L, L, False),     # 4  fc21
        (L, L, False),     # 5  fc22   (fused into kernel slot 4)
        (L, L, True),      # 6  fc3 / fc_bn3
        (L, H2, True),     # 7  fc4 / fc_bn4
        (H2, H2, True),    # 8  linear4 / lin_bn4
        (H2, H, True),     # 9  linear5 / lin_bn5
        (H, D_in, True),   # 10 linear6 / lin_bn6
    ]


def autoencoder_kernel(x_ref, w_hbm, v_ref, out_ref, wbuf, sem, *, latent_dim):
    """Fused single-invocation forward pass.

    x_ref   : [B, PAD]        VMEM. lanes [0:D_in)=x, lanes [64:64+L)=eps noise
    w_hbm   : [NL, PAD, PAD]  HBM (pl.ANY). per-layer weights ([in,out] layout)
    v_ref   : [NL, 8, PAD]    VMEM. row0=gamma (or bias for fused fc21/22),
                              row1=beta (or zeros)
    out_ref : [B, 2*PAD]      lanes [0,PAD)=recon; [PAD+0:PAD+L)=mu,
                              [PAD+64:PAD+64+L)=logvar
    wbuf    : [2, PAD, PAD]   VMEM weight double-buffer
    sem     : DMA sems (2,)
    """
    pad = x_ref.shape[1]
    half = pad // 2
    n_layers = w_hbm.shape[0]

    def start_fetch(i):
        pltpu.make_async_copy(w_hbm.at[i], wbuf.at[i & 1], sem.at[i & 1]).start()

    def get_weight(i):
        # Wait for layer i's weights, then immediately prefetch layer i+1 so
        # its HBM fetch overlaps this layer's MXU/XLU/EUP chain.
        pltpu.make_async_copy(w_hbm.at[i], wbuf.at[i & 1], sem.at[i & 1]).wait()
        if i + 1 < n_layers:               # static Python unroll
            start_fetch(i + 1)
        return wbuf[i & 1]

    start_fetch(0)

    def linear_bn(x, i, relu):
        # Linear bias elided: it cancels exactly under the training-mode
        # batch-mean subtraction of the following BatchNorm1d.
        w = get_weight(i)
        y = jnp.dot(x, w, preferred_element_type=jnp.float32)
        vb = v_ref[i]                                  # [8, PAD]
        gamma, beta = vb[0:1, :], vb[1:2, :]
        # Single-pass BN stats: two independent sublane reductions.
        mean = jnp.mean(y, axis=0, keepdims=True)
        mean_sq = jnp.mean(y * y, axis=0, keepdims=True)
        var = jnp.maximum(mean_sq - mean * mean, 0.0)  # biased variance
        scale = gamma * jax.lax.rsqrt(var + BN_EPS)    # fused BN scale
        shift = beta - mean * scale                    # fused BN shift
        y = y * scale + shift
        return jnp.maximum(y, 0.0) if relu else y

    def linear_bias(x, i):
        w = get_weight(i)
        b = v_ref[i][0:1, :]
        return jnp.dot(x, w, preferred_element_type=jnp.float32) + b

    # x's eps lanes are harmless in encode: the matching rows of the zero-
    # padded linear1 weight are zero.
    x = x_ref[...]

    # ---------------- encode ----------------
    h = linear_bn(x, 0, True)
    h = linear_bn(h, 1, True)
    h = linear_bn(h, 2, True)
    h = linear_bn(h, 3, True)
    # Fused fc21 | fc22: mu in lanes [0:L), logvar in lanes [half:half+L).
    mu_logvar = linear_bias(h, 4)

    # ------------- reparameterize (training mode) -------------
    lane = jax.lax.broadcasted_iota(jnp.int32, (1, pad), 1)
    eps_mask = (lane >= half) & (lane < half + latent_dim)
    eps = jnp.where(eps_mask, x, 0.0)            # eps isolated to its lanes
    prod = eps * jnp.exp(0.5 * mu_logvar)        # eps*std in [half:half+L)
    # Rotate eps*std down to lanes [0:L) (XLU slot; 64 == 128-64 so direction-
    # agnostic), then add mu which already sits in lanes [0:L).
    z = pltpu.roll(prod, shift=half, axis=1) + mu_logvar
    # z lanes >= L carry finite leftovers (logvar); the zero rows of the fc3
    # weight annihilate them, so decode semantics are unaffected.

    # ---------------- decode ----------------
    h = linear_bn(z, 5, True)        # fc3 / fc_bn3
    h = linear_bn(h, 6, True)        # fc4 / fc_bn4
    h = linear_bn(h, 7, True)        # linear4 / lin_bn4
    h = linear_bn(h, 8, True)        # linear5 / lin_bn5
    recon = linear_bn(h, 9, False)   # linear6 / lin_bn6 (no ReLU)

    # Lane-dense packed output: two tile-aligned 128-lane stores, one DMA.
    out_ref[:, 0:pad] = recon
    out_ref[:, pad:2 * pad] = mu_logvar


def init_params(key, D_in, H=50, H2=12, latent_dim=3):
    """Deterministic parameter init (PyTorch-like uniform fan-in bounds)."""
    params = []
    for din, dout, has_bn in layer_config(D_in, H, H2, latent_dim):
        key, kw, kb = jax.random.split(key, 3)
        bound = 1.0 / float(din) ** 0.5
        # Weight stored as [in, out] (already transposed relative to torch).
        w = jax.random.uniform(kw, (din, dout), jnp.float32, -bound, bound)
        b = jax.random.uniform(kb, (1, dout), jnp.float32, -bound, bound)
        params += [w, b]
        if has_bn:
            params += [jnp.ones((1, dout), jnp.float32),   # gamma
                       jnp.zeros((1, dout), jnp.float32)]  # beta
    return params


def pack_params(params, D_in, H=50, H2=12, latent_dim=3, pad=PAD):
    """Pack the 11 torch layers into 10 zero-padded kernel slots.

    Slot 4 fuses fc21 (cols [0:L)) and fc22 (cols [64:64+L)). BN layers drop
    the linear bias (exact under training-mode batch-mean subtraction); their
    v rows carry gamma/beta, zero-padded so padded lanes stay exactly zero.
    """
    half = pad // 2
    layers = layer_config(D_in, H, H2, latent_dim)
    per_layer, idx = [], 0
    for din, dout, has_bn in layers:
        w, b = params[idx], params[idx + 1]
        idx += 2
        g = bt = None
        if has_bn:
            g, bt = params[idx], params[idx + 1]
            idx += 2
        per_layer.append((din, dout, w, b, g, bt))

    w_blocks, v_blocks = [], []
    for li, (din, dout, w, b, g, bt) in enumerate(per_layer):
        assert din <= pad and dout <= pad, "feature dim exceeds lane padding"
        if li == 5:
            continue                          # fc22 fused into slot of li == 4
        if li == 4:                           # fused fc21 | fc22 (bias, no BN)
            din2, dout2, w2, b2, _, _ = per_layer[5]
            assert dout <= half and dout2 <= half
            wb = (jnp.zeros((pad, pad), jnp.float32)
                  .at[:din, :dout].set(w)
                  .at[:din2, half:half + dout2].set(w2))
            v = (jnp.zeros((8, pad), jnp.float32)
                 .at[0, :dout].set(b[0])
                 .at[0, half:half + dout2].set(b2[0]))
        else:                                 # Linear + BN (bias elided)
            wb = jnp.zeros((pad, pad), jnp.float32).at[:din, :dout].set(w)
            v = (jnp.zeros((8, pad), jnp.float32)
                 .at[0, :dout].set(g[0])
                 .at[1, :dout].set(bt[0]))
        w_blocks.append(wb)
        v_blocks.append(v)
    return jnp.stack(w_blocks), jnp.stack(v_blocks)


@functools.partial(jax.jit, static_argnames=("D_in", "latent_dim"))
def autoencoder_forward(x, eps_noise, w_slab, v_slab, *, D_in, latent_dim):
    B = x.shape[0]
    pad = w_slab.shape[-1]
    half = pad // 2
    n_layers = w_slab.shape[0]
    assert D_in <= half and latent_dim <= half, (
        "lane-packing of eps into x requires D_in, latent_dim <= 64")
    # TODO(synk): for D_in > 64 pass eps as a separate padded input instead of
    # lane-packing it into x's upper half.

    # One [B, 128] input tile: x in lanes [0:D_in), eps in lanes [64:64+L).
    x_packed = jnp.concatenate(
        [jnp.pad(x.astype(jnp.float32), ((0, 0), (0, half - D_in))),
         jnp.pad(eps_noise.astype(jnp.float32),
                 ((0, 0), (0, half - latent_dim)))],
        axis=1)

    vmem = pl.BlockSpec(memory_space=pltpu.MemorySpace.VMEM)
    cost = pl.CostEstimate(
        flops=2 * B * pad * pad * n_layers,
        transcendentals=B * pad + 10 * pad,            # exp + per-layer rsqrt
        bytes_accessed=4 * (w_slab.size + v_slab.size
                            + x_packed.size + B * 2 * pad),
    )

    kernel = functools.partial(autoencoder_kernel, latent_dim=latent_dim)
    out = pl.pallas_call(
        kernel,
        out_shape=jax.ShapeDtypeStruct((B, 2 * pad), jnp.float32),
        in_specs=[vmem,                                  # x_packed -> VMEM
                  pl.BlockSpec(memory_space=pl.ANY),     # w_slab stays in HBM
                  vmem],                                 # v_slab   -> VMEM
        out_specs=vmem,
        scratch_shapes=[pltpu.VMEM((2, pad, pad), jnp.float32),  # weight dbuf
                        pltpu.SemaphoreType.DMA((2,))],
        compiler_params=pltpu.CompilerParams(
            # Explicit VMEM budget (caps safely below v7x's 64 MiB ceiling).
            vmem_limit_bytes=int(min(48 * 1024 * 1024,
                                     4 * 1024 * 1024 + 64 * B * pad * 4))),
        cost_estimate=cost,
    )(x_packed, w_slab, v_slab)

    recon = out[:, :D_in]
    mu = out[:, pad:pad + latent_dim]
    logvar = out[:, pad + half:pad + half + latent_dim]
    return recon, mu, logvar


if __name__ == "__main__":
    # Small, deterministic example shapes consistent with the module.
    B, D_in, H, H2, LATENT = 8, 16, 50, 12, 3

    key = jax.random.PRNGKey(0)
    k_x, k_eps, k_params = jax.random.split(key, 3)

    x = jax.random.normal(k_x, (B, D_in), jnp.float32)
    eps_noise = jax.random.normal(k_eps, (B, LATENT), jnp.float32)
    params = init_params(k_params, D_in, H=H, H2=H2, latent_dim=LATENT)
    w_slab, v_slab = pack_params(params, D_in, H=H, H2=H2, latent_dim=LATENT)

    recon, mu, logvar = autoencoder_forward(
        x, eps_noise, w_slab, v_slab, D_in=D_in, latent_dim=LATENT)
    jax.block_until_ready((recon, mu, logvar))

    assert recon.shape == (B, D_in)
    assert mu.shape == (B, LATENT)
    assert logvar.shape == (B, LATENT)
    print("KERNEL_OK")
</pallas_src>

<mosaic_0001>
module attributes {stable_mosaic.version = 11 : i64} {
  func.func @autoencoder_kernel(%arg0: memref<8x128xf32, #tpu.memory_space<vmem>>, %arg1: memref<10x128x128xf32, #tpu.memory_space<any>>, %arg2: memref<10x8x128xf32, #tpu.memory_space<vmem>>, %arg3: memref<8x256xf32, #tpu.memory_space<vmem>>, %arg4: memref<2x128x128xf32, #tpu.memory_space<vmem>>, %arg5: memref<2x!tpu.dma_semaphore, #tpu.memory_space<semaphore_mem>>) attributes {dimension_semantics = [], scalar_prefetch = 0 : i64, scratch_operands = 2 : i64, tpu.core_type = #tpu.core_type<tc>} {
    %c0_i32 = arith.constant 0 : i32
    %c0_i32_0 = arith.constant 0 : i32
    %c0_i32_1 = arith.constant 0 : i32
    %c0_i32_2 = arith.constant 0 : i32
    %c0_i32_3 = arith.constant 0 : i32
    %0 = tpu.memref_slice %arg1[%c0_i32, %c0_i32_2, %c0_i32_3] : memref<10x128x128xf32, #tpu.memory_space<any>> -> memref<1x128x128xf32, #tpu.memory_space<any>>
    %1 = tpu.memref_squeeze %0 : memref<1x128x128xf32, #tpu.memory_space<any>> -> memref<128x128xf32, #tpu.memory_space<any>>
    %c0_i32_4 = arith.constant 0 : i32
    %c0_i32_5 = arith.constant 0 : i32
    %2 = tpu.memref_slice %arg4[%c0_i32_0, %c0_i32_4, %c0_i32_5] : memref<2x128x128xf32, #tpu.memory_space<vmem>> -> memref<1x128x128xf32, #tpu.memory_space<vmem>>
    %3 = tpu.memref_squeeze %2 : memref<1x128x128xf32, #tpu.memory_space<vmem>> -> memref<128x128xf32, #tpu.memory_space<vmem>>
    %4 = tpu.memref_slice %arg5[%c0_i32_1] : memref<2x!tpu.dma_semaphore, #tpu.memory_space<semaphore_mem>> -> memref<1x!tpu.dma_semaphore, #tpu.memory_space<semaphore_mem>>
    %5 = tpu.memref_squeeze %4 : memref<1x!tpu.dma_semaphore, #tpu.memory_space<semaphore_mem>> -> memref<!tpu.dma_semaphore, #tpu.memory_space<semaphore_mem>>
    tpu.enqueue_dma source(%1 : memref<128x128xf32, #tpu.memory_space<any>>) target(%3 : memref<128x128xf32, #tpu.memory_space<vmem>>) target_semaphore(%5 : memref<!tpu.dma_semaphore, #tpu.memory_space<semaphore_mem>>)
    %c0 = arith.constant 0 : index
    %c0_6 = arith.constant 0 : index
    %6 = vector.load %arg0[%c0, %c0_6] : memref<8x128xf32, #tpu.memory_space<vmem>>, vector<8x128xf32>
    %c0_i32_7 = arith.constant 0 : i32
    %c0_i32_8 = arith.constant 0 : i32
    %c0_i32_9 = arith.constant 0 : i32
    %c0_i32_10 = arith.constant 0 : i32
    %c0_i32_11 = arith.constant 0 : i32
    %7 = tpu.memref_slice %arg1[%c0_i32_7, %c0_i32_10, %c0_i32_11] : memref<10x128x128xf32, #tpu.memory_space<any>> -> memref<1x128x128xf32, #tpu.memory_space<any>>
    %8 = tpu.memref_squeeze %7 : memref<1x128x128xf32, #tpu.memory_space<any>> -> memref<128x128xf32, #tpu.memory_space<any>>
    %c0_i32_12 = arith.constant 0 : i32
    %c0_i32_13 = arith.constant 0 : i32
    %9 = tpu.memref_slice %arg4[%c0_i32_8, %c0_i32_12, %c0_i32_13] : memref<2x128x128xf32, #tpu.memory_space<vmem>> -> memref<1x128x128xf32, #tpu.memory_space<vmem>>
    %10 = tpu.memref_squeeze %9 : memref<1x128x128xf32, #tpu.memory_space<vmem>> -> memref<128x128xf32, #tpu.memory_space<vmem>>
    %11 = tpu.memref_slice %arg5[%c0_i32_9] : memref<2x!tpu.dma_semaphore, #tpu.memory_space<semaphore_mem>> -> memref<1x!tpu.dma_semaphore, #tpu.memory_space<semaphore_mem>>
    %12 = tpu.memref_squeeze %11 : memref<1x!tpu.dma_semaphore, #tpu.memory_space<semaphore_mem>> -> memref<!tpu.dma_semaphore, #tpu.memory_space<semaphore_mem>>
    tpu.wait_dma2 semaphore(%12 : memref<!tpu.dma_semaphore, #tpu.memory_space<semaphore_mem>>) src(%8 : memref<128x128xf32, #tpu.memory_space<any>>) dst(%10 : memref<128x128xf32, #tpu.memory_space<vmem>>)
    %c1_i32 = arith.constant 1 : i32
    %c1_i32_14 = arith.constant 1 : i32
    %c1_i32_15 = arith.constant 1 : i32
    %c0_i32_16 = arith.constant 0 : i32
    %c0_i32_17 = arith.constant 0 : i32
    %13 = tpu.memref_slice %arg1[%c1_i32, %c0_i32_16, %c0_i32_17] : memref<10x128x128xf32, #tpu.memory_space<any>> -> memref<1x128x128xf32, #tpu.memory_space<any>>
    %14 = tpu.memref_squeeze %13 : memref<1x128x128xf32, #tpu.memory_space<any>> -> memref<128x128xf32, #tpu.memory_space<any>>
    %c0_i32_18 = arith.constant 0 : i32
    %c0_i32_19 = arith.constant 0 : i32
    %15 = tpu.memref_slice %arg4[%c1_i32_14, %c0_i32_18, %c0_i32_19] : memref<2x128x128xf32, #tpu.memory_space<vmem>> -> memref<1x128x128xf32, #tpu.memory_space<vmem>>
    %16 = tpu.memref_squeeze %15 : memref<1x128x128xf32, #tpu.memory_space<vmem>> -> memref<128x128xf32, #tpu.memory_space<vmem>>
    %17 = tpu.memref_slice %arg5[%c1_i32_15] : memref<2x!tpu.dma_semaphore, #tpu.memory_space<semaphore_mem>> -> memref<1x!tpu.dma_semaphore, #tpu.memory_space<semaphore_mem>>
    %18 = tpu.memref_squeeze %17 : memref<1x!tpu.dma_semaphore, #tpu.memory_space<semaphore_mem>> -> memref<!tpu.dma_semaphore, #tpu.memory_space<semaphore_mem>>
    tpu.enqueue_dma source(%14 : memref<128x128xf32, #tpu.memory_space<any>>) target(%16 : memref<128x128xf32, #tpu.memory_space<vmem>>) target_semaphore(%18 : memref<!tpu.dma_semaphore, #tpu.memory_space<semaphore_mem>>)
    %c0_20 = arith.constant 0 : index
    %c0_21 = arith.constant 0 : index
    %c0_22 = arith.constant 0 : index
    %19 = vector.load %arg4[%c0_20, %c0_21, %c0_22] : memref<2x128x128xf32, #tpu.memory_space<vmem>>, vector<1x128x128xf32>
    %20 = vector.shape_cast %19 : vector<1x128x128xf32> to vector<128x128xf32>
    %cst = arith.constant dense<0.000000e+00> : vector<8x128xf32>
    %21 = tpu.matmul %6, %20, %cst {dimension_numbers = #tpu.dot_dimension_numbers<[1], [0], [0], [1], [0, 0, 1, 1], [], []>} : vector<8x128xf32>, vector<128x128xf32>, vector<8x128xf32> -> vector<8x128xf32>
    %c0_23 = arith.constant 0 : index
    %c0_24 = arith.constant 0 : index
    %c0_25 = arith.constant 0 : index
    %22 = vector.load %arg2[%c0_23, %c0_24, %c0_25] : memref<10x8x128xf32, #tpu.memory_space<vmem>>, vector<1x8x128xf32>
    %23 = vector.shape_cast %22 : vector<1x8x128xf32> to vector<8x128xf32>
    %24 = vector.extract_strided_slice %23 {offsets = [0, 0], sizes = [1, 128], strides = [1, 1]} : vector<8x128xf32> to vector<1x128xf32>
    %25 = vector.extract_strided_slice %23 {offsets = [1, 0], sizes = [1, 128], strides = [1, 1]} : vector<8x128xf32> to vector<1x128xf32>
    %cst_26 = arith.constant dense<0.000000e+00> : vector<128xf32>
    %26 = vector.multi_reduction <add>, %21, %cst_26 [0] : vector<8x128xf32> to vector<128xf32>
    %27 = vector.shape_cast %26 : vector<128xf32> to vector<1x128xf32>
    %cst_27 = arith.constant 8.000000e+00 : f32
    %28 = vector.broadcast %cst_27 : f32 to vector<1x128xf32>
    %29 = arith.divf %27, %28 : vector<1x128xf32>
    %30 = arith.mulf %21, %21 : vector<8x128xf32>
    %cst_28 = arith.constant dense<0.000000e+00> : vector<128xf32>
    %31 = vector.multi_reduction <add>, %30, %cst_28 [0] : vector<8x128xf32> to vector<128xf32>
    %32 = vector.shape_cast %31 : vector<128xf32> to vector<1x128xf32>
    %cst_29 = arith.constant 8.000000e+00 : f32
    %33 = vector.broadcast %cst_29 : f32 to vector<1x128xf32>
    %34 = arith.divf %32, %33 : vector<1x128xf32>
    %35 = arith.mulf %29, %29 : vector<1x128xf32>
    %36 = arith.subf %34, %35 : vector<1x128xf32>
    %cst_30 = arith.constant 0.000000e+00 : f32
    %37 = vector.broadcast %cst_30 : f32 to vector<1x128xf32>
    %38 = arith.maximumf %36, %37 : vector<1x128xf32>
    %cst_31 = arith.constant 9.99999974E-6 : f32
    %39 = vector.broadcast %cst_31 : f32 to vector<1x128xf32>
    %40 = arith.addf %38, %39 : vector<1x128xf32>
    %41 = math.rsqrt %40 : vector<1x128xf32>
    %42 = arith.mulf %24, %41 : vector<1x128xf32>
    %43 = arith.mulf %29, %42 : vector<1x128xf32>
    %44 = arith.subf %25, %43 : vector<1x128xf32>
    %45 = vector.broadcast %42 : vector<1x128xf32> to vector<8x128xf32>
    %46 = arith.mulf %21, %45 : vector<8x128xf32>
    %47 = vector.broadcast %44 : vector<1x128xf32> to vector<8x128xf32>
    %48 = arith.addf %46, %47 : vector<8x128xf32>
    %cst_32 = arith.constant 0.000000e+00 : f32
    %49 = vector.broadcast %cst_32 : f32 to vector<8x128xf32>
    %50 = arith.maximumf %48, %49 : vector<8x128xf32>
    %c1_i32_33 = arith.constant 1 : i32
    %c1_i32_34 = arith.constant 1 : i32
    %c1_i32_35 = arith.constant 1 : i32
    %c0_i32_36 = arith.constant 0 : i32
    %c0_i32_37 = arith.constant 0 : i32
    %51 = tpu.memref_slice %arg1[%c1_i32_33, %c0_i32_36, %c0_i32_37] : memref<10x128x128xf32, #tpu.memory_space<any>> -> memref<1x128x128xf32, #tpu.memory_space<any>>
    %52 = tpu.memref_squeeze %51 : memref<1x128x128xf32, #tpu.memory_space<any>> -> memref<128x128xf32, #tpu.memory_space<any>>
    %c0_i32_38 = arith.constant 0 : i32
    %c0_i32_39 = arith.constant 0 : i32
    %53 = tpu.memref_slice %arg4[%c1_i32_34, %c0_i32_38, %c0_i32_39] : memref<2x128x128xf32, #tpu.memory_space<vmem>> -> memref<1x128x128xf32, #tpu.memory_space<vmem>>
    %54 = tpu.memref_squeeze %53 : memref<1x128x128xf32, #tpu.memory_space<vmem>> -> memref<128x128xf32, #tpu.memory_space<vmem>>
    %55 = tpu.memref_slice %arg5[%c1_i32_35] : memref<2x!tpu.dma_semaphore, #tpu.memory_space<semaphore_mem>> -> memref<1x!tpu.dma_semaphore, #tpu.memory_space<semaphore_mem>>
    %56 = tpu.memref_squeeze %55 : memref<1x!tpu.dma_semaphore, #tpu.memory_space<semaphore_mem>> -> memref<!tpu.dma_semaphore, #tpu.memory_space<semaphore_mem>>
    tpu.wait_dma2 semaphore(%56 : memref<!tpu.dma_semaphore, #tpu.memory_space<semaphore_mem>>) src(%52 : memref<128x128xf32, #tpu.memory_space<any>>) dst(%54 : memref<128x128xf32, #tpu.memory_space<vmem>>)
    %c2_i32 = arith.constant 2 : i32
    %c0_i32_40 = arith.constant 0 : i32
    %c0_i32_41 = arith.constant 0 : i32
    %c0_i32_42 = arith.constant 0 : i32
    %c0_i32_43 = arith.constant 0 : i32
    %57 = tpu.memref_slice %arg1[%c2_i32, %c0_i32_42, %c0_i32_43] : memref<10x128x128xf32, #tpu.memory_space<any>> -> memref<1x128x128xf32, #tpu.memory_space<any>>
    %58 = tpu.memref_squeeze %57 : memref<1x128x128xf32, #tpu.memory_space<any>> -> memref<128x128xf32, #tpu.memory_space<any>>
    %c0_i32_44 = arith.constant 0 : i32
    %c0_i32_45 = arith.constant 0 : i32
    %59 = tpu.memref_slice %arg4[%c0_i32_40, %c0_i32_44, %c0_i32_45] : memref<2x128x128xf32, #tpu.memory_space<vmem>> -> memref<1x128x128xf32, #tpu.memory_space<vmem>>
    %60 = tpu.memref_squeeze %59 : memref<1x128x128xf32, #tpu.memory_space<vmem>> -> memref<128x128xf32, #tpu.memory_space<vmem>>
    %61 = tpu.memref_slice %arg5[%c0_i32_41] : memref<2x!tpu.dma_semaphore, #tpu.memory_space<semaphore_mem>> -> memref<1x!tpu.dma_semaphore, #tpu.memory_space<semaphore_mem>>
    %62 = tpu.memref_squeeze %61 : memref<1x!tpu.dma_semaphore, #tpu.memory_space<semaphore_mem>> -> memref<!tpu.dma_semaphore, #tpu.memory_space<semaphore_mem>>
    tpu.enqueue_dma source(%58 : memref<128x128xf32, #tpu.memory_space<any>>) target(%60 : memref<128x128xf32, #tpu.memory_space<vmem>>) target_semaphore(%62 : memref<!tpu.dma_semaphore, #tpu.memory_space<semaphore_mem>>)
    %c1 = arith.constant 1 : index
    %c0_46 = arith.constant 0 : index
    %c0_47 = arith.constant 0 : index
    %63 = vector.load %arg4[%c1, %c0_46, %c0_47] : memref<2x128x128xf32, #tpu.memory_space<vmem>>, vector<1x128x128xf32>
    %64 = vector.shape_cast %63 : vector<1x128x128xf32> to vector<128x128xf32>
    %cst_48 = arith.constant dense<0.000000e+00> : vector<8x128xf32>
    %65 = tpu.matmul %50, %64, %cst_48 {dimension_numbers = #tpu.dot_dimension_numbers<[1], [0], [0], [1], [0, 0, 1, 1], [], []>} : vector<8x128xf32>, vector<128x128xf32>, vector<8x128xf32> -> vector<8x128xf32>
    %c1_49 = arith.constant 1 : index
    %c0_50 = arith.constant 0 : index
    %c0_51 = arith.constant 0 : index
    %66 = vector.load %arg2[%c1_49, %c0_50, %c0_51] : memref<10x8x128xf32, #tpu.memory_space<vmem>>, vector<1x8x128xf32>
    %67 = vector.shape_cast %66 : vector<1x8x128xf32> to vector<8x128xf32>
    %68 = vector.extract_strided_slice %67 {offsets = [0, 0], sizes = [1, 128], strides = [1, 1]} : vector<8x128xf32> to vector<1x128xf32>
    %69 = vector.extract_strided_slice %67 {offsets = [1, 0], sizes = [1, 128], strides = [1, 1]} : vector<8x128xf32> to vector<1x128xf32>
    %cst_52 = arith.constant dense<0.000000e+00> : vector<128xf32>
    %70 = vector.multi_reduction <add>, %65, %cst_52 [0] : vector<8x128xf32> to vector<128xf32>
    %71 = vector.shape_cast %70 : vector<128xf32> to vector<1x128xf32>
    %cst_53 = arith.constant 8.000000e+00 : f32
    %72 = vector.broadcast %cst_53 : f32 to vector<1x128xf32>
    %73 = arith.divf %71, %72 : vector<1x128xf32>
    %74 = arith.mulf %65, %65 : vector<8x128xf32>
    %cst_54 = arith.constant dense<0.000000e+00> : vector<128xf32>
    %75 = vector.multi_reduction <add>, %74, %cst_54 [0] : vector<8x128xf32> to vector<128xf32>
    %76 = vector.shape_cast %75 : vector<128xf32> to vector<1x128xf32>
    %cst_55 = arith.constant 8.000000e+00 : f32
    %77 = vector.broadcast %cst_55 : f32 to vector<1x128xf32>
    %78 = arith.divf %76, %77 : vector<1x128xf32>
    %79 = arith.mulf %73, %73 : vector<1x128xf32>
    %80 = arith.subf %78, %79 : vector<1x128xf32>
    %cst_56 = arith.constant 0.000000e+00 : f32
    %81 = vector.broadcast %cst_56 : f32 to vector<1x128xf32>
    %82 = arith.maximumf %80, %81 : vector<1x128xf32>
    %cst_57 = arith.constant 9.99999974E-6 : f32
    %83 = vector.broadcast %cst_57 : f32 to vector<1x128xf32>
    %84 = arith.addf %82, %83 : vector<1x128xf32>
    %85 = math.rsqrt %84 : vector<1x128xf32>
    %86 = arith.mulf %68, %85 : vector<1x128xf32>
    %87 = arith.mulf %73, %86 : vector<1x128xf32>
    %88 = arith.subf %69, %87 : vector<1x128xf32>
    %89 = vector.broadcast %86 : vector<1x128xf32> to vector<8x128xf32>
    %90 = arith.mulf %65, %89 : vector<8x128xf32>
    %91 = vector.broadcast %88 : vector<1x128xf32> to vector<8x128xf32>
    %92 = arith.addf %90, %91 : vector<8x128xf32>
    %cst_58 = arith.constant 0.000000e+00 : f32
    %93 = vector.broadcast %cst_58 : f32 to vector<8x128xf32>
    %94 = arith.maximumf %92, %93 : vector<8x128xf32>
    %c2_i32_59 = arith.constant 2 : i32
    %c0_i32_60 = arith.constant 0 : i32
    %c0_i32_61 = arith.constant 0 : i32
    %c0_i32_62 = arith.constant 0 : i32
    %c0_i32_63 = arith.constant 0 : i32
    %95 = tpu.memref_slice %arg1[%c2_i32_59, %c0_i32_62, %c0_i32_63] : memref<10x128x128xf32, #tpu.memory_space<any>> -> memref<1x128x128xf32, #tpu.memory_space<any>>
    %96 = tpu.memref_squeeze %95 : memref<1x128x128xf32, #tpu.memory_space<any>> -> memref<128x128xf32, #tpu.memory_space<any>>
    %c0_i32_64 = arith.constant 0 : i32
    %c0_i32_65 = arith.constant 0 : i32
    %97 = tpu.memref_slice %arg4[%c0_i32_60, %c0_i32_64, %c0_i32_65] : memref<2x128x128xf32, #tpu.memory_space<vmem>> -> memref<1x128x128xf32, #tpu.memory_space<vmem>>
    %98 = tpu.memref_squeeze %97 : memref<1x128x128xf32, #tpu.memory_space<vmem>> -> memref<128x128xf32, #tpu.memory_space<vmem>>
    %99 = tpu.memref_slice %arg5[%c0_i32_61] : memref<2x!tpu.dma_semaphore, #tpu.memory_space<semaphore_mem>> -> memref<1x!tpu.dma_semaphore, #tpu.memory_space<semaphore_mem>>
    %100 = tpu.memref_squeeze %99 : memref<1x!tpu.dma_semaphore, #tpu.memory_space<semaphore_mem>> -> memref<!tpu.dma_semaphore, #tpu.memory_space<semaphore_mem>>
    tpu.wait_dma2 semaphore(%100 : memref<!tpu.dma_semaphore, #tpu.memory_space<semaphore_mem>>) src(%96 : memref<128x128xf32, #tpu.memory_space<any>>) dst(%98 : memref<128x128xf32, #tpu.memory_space<vmem>>)
    %c3_i32 = arith.constant 3 : i32
    %c1_i32_66 = arith.constant 1 : i32
    %c1_i32_67 = arith.constant 1 : i32
    %c0_i32_68 = arith.constant 0 : i32
    %c0_i32_69 = arith.constant 0 : i32
    %101 = tpu.memref_slice %arg1[%c3_i32, %c0_i32_68, %c0_i32_69] : memref<10x128x128xf32, #tpu.memory_space<any>> -> memref<1x128x128xf32, #tpu.memory_space<any>>
    %102 = tpu.memref_squeeze %101 : memref<1x128x128xf32, #tpu.memory_space<any>> -> memref<128x128xf32, #tpu.memory_space<any>>
    %c0_i32_70 = arith.constant 0 : i32
    %c0_i32_71 = arith.constant 0 : i32
    %103 = tpu.memref_slice %arg4[%c1_i32_66, %c0_i32_70, %c0_i32_71] : memref<2x128x128xf32, #tpu.memory_space<vmem>> -> memref<1x128x128xf32, #tpu.memory_space<vmem>>
    %104 = tpu.memref_squeeze %103 : memref<1x128x128xf32, #tpu.memory_space<vmem>> -> memref<128x128xf32, #tpu.memory_space<vmem>>
    %105 = tpu.memref_slice %arg5[%c1_i32_67] : memref<2x!tpu.dma_semaphore, #tpu.memory_space<semaphore_mem>> -> memref<1x!tpu.dma_semaphore, #tpu.memory_space<semaphore_mem>>
    %106 = tpu.memref_squeeze %105 : memref<1x!tpu.dma_semaphore, #tpu.memory_space<semaphore_mem>> -> memref<!tpu.dma_semaphore, #tpu.memory_space<semaphore_mem>>
    tpu.enqueue_dma source(%102 : memref<128x128xf32, #tpu.memory_space<any>>) target(%104 : memref<128x128xf32, #tpu.memory_space<vmem>>) target_semaphore(%106 : memref<!tpu.dma_semaphore, #tpu.memory_space<semaphore_mem>>)
    %c0_72 = arith.constant 0 : index
    %c0_73 = arith.constant 0 : index
    %c0_74 = arith.constant 0 : index
    %107 = vector.load %arg4[%c0_72, %c0_73, %c0_74] : memref<2x128x128xf32, #tpu.memory_space<vmem>>, vector<1x128x128xf32>
    %108 = vector.shape_cast %107 : vector<1x128x128xf32> to vector<128x128xf32>
    %cst_75 = arith.constant dense<0.000000e+00> : vector<8x128xf32>
    %109 = tpu.matmul %94, %108, %cst_75 {dimension_numbers = #tpu.dot_dimension_numbers<[1], [0], [0], [1], [0, 0, 1, 1], [], []>} : vector<8x128xf32>, vector<128x128xf32>, vector<8x128xf32> -> vector<8x128xf32>
    %c2 = arith.constant 2 : index
    %c0_76 = arith.constant 0 : index
    %c0_77 = arith.constant 0 : index
    %110 = vector.load %arg2[%c2, %c0_76, %c0_77] : memref<10x8x128xf32, #tpu.memory_space<vmem>>, vector<1x8x128xf32>
    %111 = vector.shape_cast %110 : vector<1x8x128xf32> to vector<8x128xf32>
    %112 = vector.extract_strided_slice %111 {offsets = [0, 0], sizes = [1, 128], strides = [1, 1]} : vector<8x128xf32> to vector<1x128xf32>
    %113 = vector.extract_strided_slice %111 {offsets = [1, 0], sizes = [1, 128], strides = [1, 1]} : vector<8x128xf32> to vector<1x128xf32>
    %cst_78 = arith.constant dense<0.000000e+00> : vector<128xf32>
    %114 = vector.multi_reduction <add>, %109, %cst_78 [0] : vector<8x128xf32> to vector<128xf32>
    %115 = vector.shape_cast %114 : vector<128xf32> to vector<1x128xf32>
    %cst_79 = arith.constant 8.000000e+00 : f32
    %116 = vector.broadcast %cst_79 : f32 to vector<1x128xf32>
    %117 = arith.divf %115, %116 : vector<1x128xf32>
    %118 = arith.mulf %109, %109 : vector<8x128xf32>
    %cst_80 = arith.constant dense<0.000000e+00> : vector<128xf32>
    %119 = vector.multi_reduction <add>, %118, %cst_80 [0] : vector<8x128xf32> to vector<128xf32>
    %120 = vector.shape_cast %119 : vector<128xf32> to vector<1x128xf32>
    %cst_81 = arith.constant 8.000000e+00 : f32
    %121 = vector.broadcast %cst_81 : f32 to vector<1x128xf32>
    %122 = arith.divf %120, %121 : vector<1x128xf32>
    %123 = arith.mulf %117, %117 : vector<1x128xf32>
    %124 = arith.subf %122, %123 : vector<1x128xf32>
    %cst_82 = arith.constant 0.000000e+00 : f32
    %125 = vector.broadcast %cst_82 : f32 to vector<1x128xf32>
    %126 = arith.maximumf %124, %125 : vector<1x128xf32>
    %cst_83 = arith.constant 9.99999974E-6 : f32
    %127 = vector.broadcast %cst_83 : f32 to vector<1x128xf32>
    %128 = arith.addf %126, %127 : vector<1x128xf32>
    %129 = math.rsqrt %128 : vector<1x128xf32>
    %130 = arith.mulf %112, %129 : vector<1x128xf32>
    %131 = arith.mulf %117, %130 : vector<1x128xf32>
    %132 = arith.subf %113, %131 : vector<1x128xf32>
    %133 = vector.broadcast %130 : vector<1x128xf32> to vector<8x128xf32>
    %134 = arith.mulf %109, %133 : vector<8x128xf32>
    %135 = vector.broadcast %132 : vector<1x128xf32> to vector<8x128xf32>
    %136 = arith.addf %134, %135 : vector<8x128xf32>
    %cst_84 = arith.constant 0.000000e+00 : f32
    %137 = vector.broadcast %cst_84 : f32 to vector<8x128xf32>
    %138 = arith.maximumf %136, %137 : vector<8x128xf32>
    %c3_i32_85 = arith.constant 3 : i32
    %c1_i32_86 = arith.constant 1 : i32
    %c1_i32_87 = arith.constant 1 : i32
    %c0_i32_88 = arith.constant 0 : i32
    %c0_i32_89 = arith.constant 0 : i32
    %139 = tpu.memref_slice %arg1[%c3_i32_85, %c0_i32_88, %c0_i32_89] : memref<10x128x128xf32, #tpu.memory_space<any>> -> memref<1x128x128xf32, #tpu.memory_space<any>>
    %140 = tpu.memref_squeeze %139 : memref<1x128x128xf32, #tpu.memory_space<any>> -> memref<128x128xf32, #tpu.memory_space<any>>
    %c0_i32_90 = arith.constant 0 : i32
    %c0_i32_91 = arith.constant 0 : i32
    %141 = tpu.memref_slice %arg4[%c1_i32_86, %c0_i32_90, %c0_i32_91] : memref<2x128x128xf32, #tpu.memory_space<vmem>> -> memref<1x128x128xf32, #tpu.memory_space<vmem>>
    %142 = tpu.memref_squeeze %141 : memref<1x128x128xf32, #tpu.memory_space<vmem>> -> memref<128x128xf32, #tpu.memory_space<vmem>>
    %143 = tpu.memref_slice %arg5[%c1_i32_87] : memref<2x!tpu.dma_semaphore, #tpu.memory_space<semaphore_mem>> -> memref<1x!tpu.dma_semaphore, #tpu.memory_space<semaphore_mem>>
    %144 = tpu.memref_squeeze %143 : memref<1x!tpu.dma_semaphore, #tpu.memory_space<semaphore_mem>> -> memref<!tpu.dma_semaphore, #tpu.memory_space<semaphore_mem>>
    tpu.wait_dma2 semaphore(%144 : memref<!tpu.dma_semaphore, #tpu.memory_space<semaphore_mem>>) src(%140 : memref<128x128xf32, #tpu.memory_space<any>>) dst(%142 : memref<128x128xf32, #tpu.memory_space<vmem>>)
    %c4_i32 = arith.constant 4 : i32
    %c0_i32_92 = arith.constant 0 : i32
    %c0_i32_93 = arith.constant 0 : i32
    %c0_i32_94 = arith.constant 0 : i32
    %c0_i32_95 = arith.constant 0 : i32
    %145 = tpu.memref_slice %arg1[%c4_i32, %c0_i32_94, %c0_i32_95] : memref<10x128x128xf32, #tpu.memory_space<any>> -> memref<1x128x128xf32, #tpu.memory_space<any>>
    %146 = tpu.memref_squeeze %145 : memref<1x128x128xf32, #tpu.memory_space<any>> -> memref<128x128xf32, #tpu.memory_space<any>>
    %c0_i32_96 = arith.constant 0 : i32
    %c0_i32_97 = arith.constant 0 : i32
    %147 = tpu.memref_slice %arg4[%c0_i32_92, %c0_i32_96, %c0_i32_97] : memref<2x128x128xf32, #tpu.memory_space<vmem>> -> memref<1x128x128xf32, #tpu.memory_space<vmem>>
    %148 = tpu.memref_squeeze %147 : memref<1x128x128xf32, #tpu.memory_space<vmem>> -> memref<128x128xf32, #tpu.memory_space<vmem>>
    %149 = tpu.memref_slice %arg5[%c0_i32_93] : memref<2x!tpu.dma_semaphore, #tpu.memory_space<semaphore_mem>> -> memref<1x!tpu.dma_semaphore, #tpu.memory_space<semaphore_mem>>
    %150 = tpu.memref_squeeze %149 : memref<1x!tpu.dma_semaphore, #tpu.memory_space<semaphore_mem>> -> memref<!tpu.dma_semaphore, #tpu.memory_space<semaphore_mem>>
    tpu.enqueue_dma source(%146 : memref<128x128xf32, #tpu.memory_space<any>>) target(%148 : memref<128x128xf32, #tpu.memory_space<vmem>>) target_semaphore(%150 : memref<!tpu.dma_semaphore, #tpu.memory_space<semaphore_mem>>)
    %c1_98 = arith.constant 1 : index
    %c0_99 = arith.constant 0 : index
    %c0_100 = arith.constant 0 : index
    %151 = vector.load %arg4[%c1_98, %c0_99, %c0_100] : memref<2x128x128xf32, #tpu.memory_space<vmem>>, vector<1x128x128xf32>
    %152 = vector.shape_cast %151 : vector<1x128x128xf32> to vector<128x128xf32>
    %cst_101 = arith.constant dense<0.000000e+00> : vector<8x128xf32>
    %153 = tpu.matmul %138, %152, %cst_101 {dimension_numbers = #tpu.dot_dimension_numbers<[1], [0], [0], [1], [0, 0, 1, 1], [], []>} : vector<8x128xf32>, vector<128x128xf32>, vector<8x128xf32> -> vector<8x128xf32>
    %c3 = arith.constant 3 : index
    %c0_102 = arith.constant 0 : index
    %c0_103 = arith.constant 0 : index
    %154 = vector.load %arg2[%c3, %c0_102, %c0_103] : memref<10x8x128xf32, #tpu.memory_space<vmem>>, vector<1x8x128xf32>
    %155 = vector.shape_cast %154 : vector<1x8x128xf32> to vector<8x128xf32>
    %156 = vector.extract_strided_slice %155 {offsets = [0, 0], sizes = [1, 128], strides = [1, 1]} : vector<8x128xf32> to vector<1x128xf32>
    %157 = vector.extract_strided_slice %155 {offsets = [1, 0], sizes = [1, 128], strides = [1, 1]} : vector<8x128xf32> to vector<1x128xf32>
    %cst_104 = arith.constant dense<0.000000e+00> : vector<128xf32>
    %158 = vector.multi_reduction <add>, %153, %cst_104 [0] : vector<8x128xf32> to vector<128xf32>
    %159 = vector.shape_cast %158 : vector<128xf32> to vector<1x128xf32>
    %cst_105 = arith.constant 8.000000e+00 : f32
    %160 = vector.broadcast %cst_105 : f32 to vector<1x128xf32>
    %161 = arith.divf %159, %160 : vector<1x128xf32>
    %162 = arith.mulf %153, %153 : vector<8x128xf32>
    %cst_106 = arith.constant dense<0.000000e+00> : vector<128xf32>
    %163 = vector.multi_reduction <add>, %162, %cst_106 [0] : vector<8x128xf32> to vector<128xf32>
    %164 = vector.shape_cast %163 : vector<128xf32> to vector<1x128xf32>
    %cst_107 = arith.constant 8.000000e+00 : f32
    %165 = vector.broadcast %cst_107 : f32 to vector<1x128xf32>
    %166 = arith.divf %164, %165 : vector<1x128xf32>
    %167 = arith.mulf %161, %161 : vector<1x128xf32>
    %168 = arith.subf %166, %167 : vector<1x128xf32>
    %cst_108 = arith.constant 0.000000e+00 : f32
    %169 = vector.broadcast %cst_108 : f32 to vector<1x128xf32>
    %170 = arith.maximumf %168, %169 : vector<1x128xf32>
    %cst_109 = arith.constant 9.99999974E-6 : f32
    %171 = vector.broadcast %cst_109 : f32 to vector<1x128xf32>
    %172 = arith.addf %170, %171 : vector<1x128xf32>
    %173 = math.rsqrt %172 : vector<1x128xf32>
    %174 = arith.mulf %156, %173 : vector<1x128xf32>
    %175 = arith.mulf %161, %174 : vector<1x128xf32>
    %176 = arith.subf %157, %175 : vector<1x128xf32>
    %177 = vector.broadcast %174 : vector<1x128xf32> to vector<8x128xf32>
    %178 = arith.mulf %153, %177 : vector<8x128xf32>
    %179 = vector.broadcast %176 : vector<1x128xf32> to vector<8x128xf32>
    %180 = arith.addf %178, %179 : vector<8x128xf32>
    %cst_110 = arith.constant 0.000000e+00 : f32
    %181 = vector.broadcast %cst_110 : f32 to vector<8x128xf32>
    %182 = arith.maximumf %180, %181 : vector<8x128xf32>
    %c4_i32_111 = arith.constant 4 : i32
    %c0_i32_112 = arith.constant 0 : i32
    %c0_i32_113 = arith.constant 0 : i32
    %c0_i32_114 = arith.constant 0 : i32
    %c0_i32_115 = arith.constant 0 : i32
    %183 = tpu.memref_slice %arg1[%c4_i32_111, %c0_i32_114, %c0_i32_115] : memref<10x128x128xf32, #tpu.memory_space<any>> -> memref<1x128x128xf32, #tpu.memory_space<any>>
    %184 = tpu.memref_squeeze %183 : memref<1x128x128xf32, #tpu.memory_space<any>> -> memref<128x128xf32, #tpu.memory_space<any>>
    %c0_i32_116 = arith.constant 0 : i32
    %c0_i32_117 = arith.constant 0 : i32
    %185 = tpu.memref_slice %arg4[%c0_i32_112, %c0_i32_116, %c0_i32_117] : memref<2x128x128xf32, #tpu.memory_space<vmem>> -> memref<1x128x128xf32, #tpu.memory_space<vmem>>
    %186 = tpu.memref_squeeze %185 : memref<1x128x128xf32, #tpu.memory_space<vmem>> -> memref<128x128xf32, #tpu.memory_space<vmem>>
    %187 = tpu.memref_slice %arg5[%c0_i32_113] : memref<2x!tpu.dma_semaphore, #tpu.memory_space<semaphore_mem>> -> memref<1x!tpu.dma_semaphore, #tpu.memory_space<semaphore_mem>>
    %188 = tpu.memref_squeeze %187 : memref<1x!tpu.dma_semaphore, #tpu.memory_space<semaphore_mem>> -> memref<!tpu.dma_semaphore, #tpu.memory_space<semaphore_mem>>
    tpu.wait_dma2 semaphore(%188 : memref<!tpu.dma_semaphore, #tpu.memory_space<semaphore_mem>>) src(%184 : memref<128x128xf32, #tpu.memory_space<any>>) dst(%186 : memref<128x128xf32, #tpu.memory_space<vmem>>)
    %c5_i32 = arith.constant 5 : i32
    %c1_i32_118 = arith.constant 1 : i32
    %c1_i32_119 = arith.constant 1 : i32
    %c0_i32_120 = arith.constant 0 : i32
    %c0_i32_121 = arith.constant 0 : i32
    %189 = tpu.memref_slice %arg1[%c5_i32, %c0_i32_120, %c0_i32_121] : memref<10x128x128xf32, #tpu.memory_space<any>> -> memref<1x128x128xf32, #tpu.memory_space<any>>
    %190 = tpu.memref_squeeze %189 : memref<1x128x128xf32, #tpu.memory_space<any>> -> memref<128x128xf32, #tpu.memory_space<any>>
    %c0_i32_122 = arith.constant 0 : i32
    %c0_i32_123 = arith.constant 0 : i32
    %191 = tpu.memref_slice %arg4[%c1_i32_118, %c0_i32_122, %c0_i32_123] : memref<2x128x128xf32, #tpu.memory_space<vmem>> -> memref<1x128x128xf32, #tpu.memory_space<vmem>>
    %192 = tpu.memref_squeeze %191 : memref<1x128x128xf32, #tpu.memory_space<vmem>> -> memref<128x128xf32, #tpu.memory_space<vmem>>
    %193 = tpu.memref_slice %arg5[%c1_i32_119] : memref<2x!tpu.dma_semaphore, #tpu.memory_space<semaphore_mem>> -> memref<1x!tpu.dma_semaphore, #tpu.memory_space<semaphore_mem>>
    %194 = tpu.memref_squeeze %193 : memref<1x!tpu.dma_semaphore, #tpu.memory_space<semaphore_mem>> -> memref<!tpu.dma_semaphore, #tpu.memory_space<semaphore_mem>>
    tpu.enqueue_dma source(%190 : memref<128x128xf32, #tpu.memory_space<any>>) target(%192 : memref<128x128xf32, #tpu.memory_space<vmem>>) target_semaphore(%194 : memref<!tpu.dma_semaphore, #tpu.memory_space<semaphore_mem>>)
    %c0_124 = arith.constant 0 : index
    %c0_125 = arith.constant 0 : index
    %c0_126 = arith.constant 0 : index
    %195 = vector.load %arg4[%c0_124, %c0_125, %c0_126] : memref<2x128x128xf32, #tpu.memory_space<vmem>>, vector<1x128x128xf32>
    %196 = vector.shape_cast %195 : vector<1x128x128xf32> to vector<128x128xf32>
    %c4 = arith.constant 4 : index
    %c0_127 = arith.constant 0 : index
    %c0_128 = arith.constant 0 : index
    %197 = vector.load %arg2[%c4, %c0_127, %c0_128] : memref<10x8x128xf32, #tpu.memory_space<vmem>>, vector<1x8x128xf32>
    %198 = vector.shape_cast %197 : vector<1x8x128xf32> to vector<8x128xf32>
    %199 = vector.extract_strided_slice %198 {offsets = [0, 0], sizes = [1, 128], strides = [1, 1]} : vector<8x128xf32> to vector<1x128xf32>
    %cst_129 = arith.constant dense<0.000000e+00> : vector<8x128xf32>
    %200 = tpu.matmul %182, %196, %cst_129 {dimension_numbers = #tpu.dot_dimension_numbers<[1], [0], [0], [1], [0, 0, 1, 1], [], []>} : vector<8x128xf32>, vector<128x128xf32>, vector<8x128xf32> -> vector<8x128xf32>
    %201 = vector.broadcast %199 : vector<1x128xf32> to vector<8x128xf32>
    %202 = arith.addf %200, %201 : vector<8x128xf32>
    %203 = tpu.iota {dimensions = array<i32: 1>} : vector<1x128xi32>
    %c64_i32 = arith.constant 64 : i32
    %204 = vector.broadcast %c64_i32 : i32 to vector<1x128xi32>
    %205 = arith.cmpi sge, %203, %204 : vector<1x128xi32>
    %c67_i32 = arith.constant 67 : i32
    %206 = vector.broadcast %c67_i32 : i32 to vector<1x128xi32>
    %207 = arith.cmpi slt, %203, %206 : vector<1x128xi32>
    %208 = arith.andi %205, %207 : vector<1x128xi1>
    %cst_130 = arith.constant 0.000000e+00 : f32
    %209 = vector.shape_cast %208 : vector<1x128xi1> to vector<1x128xi1>
    %210 = vector.broadcast %209 : vector<1x128xi1> to vector<8x128xi1>
    %211 = vector.broadcast %cst_130 : f32 to vector<8x128xf32>
    %212 = arith.select %210, %6, %211 : vector<8x128xi1>, vector<8x128xf32>
    %cst_131 = arith.constant 5.000000e-01 : f32
    %213 = vector.broadcast %cst_131 : f32 to vector<8x128xf32>
    %214 = arith.mulf %213, %202 : vector<8x128xf32>
    %215 = math.exp %214 : vector<8x128xf32>
    %216 = arith.mulf %212, %215 : vector<8x128xf32>
    %c64_i32_132 = arith.constant 64 : i32
    %217 = tpu.dynamic_rotate %216 by %c64_i32_132 dim 1 : vector<8x128xf32>, i32 -> vector<8x128xf32>
    %218 = arith.addf %217, %202 : vector<8x128xf32>
    %c5_i32_133 = arith.constant 5 : i32
    %c1_i32_134 = arith.constant 1 : i32
    %c1_i32_135 = arith.constant 1 : i32
    %c0_i32_136 = arith.constant 0 : i32
    %c0_i32_137 = arith.constant 0 : i32
    %219 = tpu.memref_slice %arg1[%c5_i32_133, %c0_i32_136, %c0_i32_137] : memref<10x128x128xf32, #tpu.memory_space<any>> -> memref<1x128x128xf32, #tpu.memory_space<any>>
    %220 = tpu.memref_squeeze %219 : memref<1x128x128xf32, #tpu.memory_space<any>> -> memref<128x128xf32, #tpu.memory_space<any>>
    %c0_i32_138 = arith.constant 0 : i32
    %c0_i32_139 = arith.constant 0 : i32
    %221 = tpu.memref_slice %arg4[%c1_i32_134, %c0_i32_138, %c0_i32_139] : memref<2x128x128xf32, #tpu.memory_space<vmem>> -> memref<1x128x128xf32, #tpu.memory_space<vmem>>
    %222 = tpu.memref_squeeze %221 : memref<1x128x128xf32, #tpu.memory_space<vmem>> -> memref<128x128xf32, #tpu.memory_space<vmem>>
    %223 = tpu.memref_slice %arg5[%c1_i32_135] : memref<2x!tpu.dma_semaphore, #tpu.memory_space<semaphore_mem>> -> memref<1x!tpu.dma_semaphore, #tpu.memory_space<semaphore_mem>>
    %224 = tpu.memref_squeeze %223 : memref<1x!tpu.dma_semaphore, #tpu.memory_space<semaphore_mem>> -> memref<!tpu.dma_semaphore, #tpu.memory_space<semaphore_mem>>
    tpu.wait_dma2 semaphore(%224 : memref<!tpu.dma_semaphore, #tpu.memory_space<semaphore_mem>>) src(%220 : memref<128x128xf32, #tpu.memory_space<any>>) dst(%222 : memref<128x128xf32, #tpu.memory_space<vmem>>)
    %c6_i32 = arith.constant 6 : i32
    %c0_i32_140 = arith.constant 0 : i32
    %c0_i32_141 = arith.constant 0 : i32
    %c0_i32_142 = arith.constant 0 : i32
    %c0_i32_143 = arith.constant 0 : i32
    %225 = tpu.memref_slice %arg1[%c6_i32, %c0_i32_142, %c0_i32_143] : memref<10x128x128xf32, #tpu.memory_space<any>> -> memref<1x128x128xf32, #tpu.memory_space<any>>
    %226 = tpu.memref_squeeze %225 : memref<1x128x128xf32, #tpu.memory_space<any>> -> memref<128x128xf32, #tpu.memory_space<any>>
    %c0_i32_144 = arith.constant 0 : i32
    %c0_i32_145 = arith.constant 0 : i32
    %227 = tpu.memref_slice %arg4[%c0_i32_140, %c0_i32_144, %c0_i32_145] : memref<2x128x128xf32, #tpu.memory_space<vmem>> -> memref<1x128x128xf32, #tpu.memory_space<vmem>>
    %228 = tpu.memref_squeeze %227 : memref<1x128x128xf32, #tpu.memory_space<vmem>> -> memref<128x128xf32, #tpu.memory_space<vmem>>
    %229 = tpu.memref_slice %arg5[%c0_i32_141] : memref<2x!tpu.dma_semaphore, #tpu.memory_space<semaphore_mem>> -> memref<1x!tpu.dma_semaphore, #tpu.memory_space<semaphore_mem>>
    %230 = tpu.memref_squeeze %229 : memref<1x!tpu.dma_semaphore, #tpu.memory_space<semaphore_mem>> -> memref<!tpu.dma_semaphore, #tpu.memory_space<semaphore_mem>>
    tpu.enqueue_dma source(%226 : memref<128x128xf32, #tpu.memory_space<any>>) target(%228 : memref<128x128xf32, #tpu.memory_space<vmem>>) target_semaphore(%230 : memref<!tpu.dma_semaphore, #tpu.memory_space<semaphore_mem>>)
    %c1_146 = arith.constant 1 : index
    %c0_147 = arith.constant 0 : index
    %c0_148 = arith.constant 0 : index
    %231 = vector.load %arg4[%c1_146, %c0_147, %c0_148] : memref<2x128x128xf32, #tpu.memory_space<vmem>>, vector<1x128x128xf32>
    %232 = vector.shape_cast %231 : vector<1x128x128xf32> to vector<128x128xf32>
    %cst_149 = arith.constant dense<0.000000e+00> : vector<8x128xf32>
    %233 = tpu.matmul %218, %232, %cst_149 {dimension_numbers = #tpu.dot_dimension_numbers<[1], [0], [0], [1], [0, 0, 1, 1], [], []>} : vector<8x128xf32>, vector<128x128xf32>, vector<8x128xf32> -> vector<8x128xf32>
    %c5 = arith.constant 5 : index
    %c0_150 = arith.constant 0 : index
    %c0_151 = arith.constant 0 : index
    %234 = vector.load %arg2[%c5, %c0_150, %c0_151] : memref<10x8x128xf32, #tpu.memory_space<vmem>>, vector<1x8x128xf32>
    %235 = vector.shape_cast %234 : vector<1x8x128xf32> to vector<8x128xf32>
    %236 = vector.extract_strided_slice %235 {offsets = [0, 0], sizes = [1, 128], strides = [1, 1]} : vector<8x128xf32> to vector<1x128xf32>
    %237 = vector.extract_strided_slice %235 {offsets = [1, 0], sizes = [1, 128], strides = [1, 1]} : vector<8x128xf32> to vector<1x128xf32>
    %cst_152 = arith.constant dense<0.000000e+00> : vector<128xf32>
    %238 = vector.multi_reduction <add>, %233, %cst_152 [0] : vector<8x128xf32> to vector<128xf32>
    %239 = vector.shape_cast %238 : vector<128xf32> to vector<1x128xf32>
    %cst_153 = arith.constant 8.000000e+00 : f32
    %240 = vector.broadcast %cst_153 : f32 to vector<1x128xf32>
    %241 = arith.divf %239, %240 : vector<1x128xf32>
    %242 = arith.mulf %233, %233 : vector<8x128xf32>
    %cst_154 = arith.constant dense<0.000000e+00> : vector<128xf32>
    %243 = vector.multi_reduction <add>, %242, %cst_154 [0] : vector<8x128xf32> to vector<128xf32>
    %244 = vector.shape_cast %243 : vector<128xf32> to vector<1x128xf32>
    %cst_155 = arith.constant 8.000000e+00 : f32
    %245 = vector.broadcast %cst_155 : f32 to vector<1x128xf32>
    %246 = arith.divf %244, %245 : vector<1x128xf32>
    %247 = arith.mulf %241, %241 : vector<1x128xf32>
    %248 = arith.subf %246, %247 : vector<1x128xf32>
    %cst_156 = arith.constant 0.000000e+00 : f32
    %249 = vector.broadcast %cst_156 : f32 to vector<1x128xf32>
    %250 = arith.maximumf %248, %249 : vector<1x128xf32>
    %cst_157 = arith.constant 9.99999974E-6 : f32
    %251 = vector.broadcast %cst_157 : f32 to vector<1x128xf32>
    %252 = arith.addf %250, %251 : vector<1x128xf32>
    %253 = math.rsqrt %252 : vector<1x128xf32>
    %254 = arith.mulf %236, %253 : vector<1x128xf32>
    %255 = arith.mulf %241, %254 : vector<1x128xf32>
    %256 = arith.subf %237, %255 : vector<1x128xf32>
    %257 = vector.broadcast %254 : vector<1x128xf32> to vector<8x128xf32>
    %258 = arith.mulf %233, %257 : vector<8x128xf32>
    %259 = vector.broadcast %256 : vector<1x128xf32> to vector<8x128xf32>
    %260 = arith.addf %258, %259 : vector<8x128xf32>
    %cst_158 = arith.constant 0.000000e+00 : f32
    %261 = vector.broadcast %cst_158 : f32 to vector<8x128xf32>
    %262 = arith.maximumf %260, %261 : vector<8x128xf32>
    %c6_i32_159 = arith.constant 6 : i32
    %c0_i32_160 = arith.constant 0 : i32
    %c0_i32_161 = arith.constant 0 : i32
    %c0_i32_162 = arith.constant 0 : i32
    %c0_i32_163 = arith.constant 0 : i32
    %263 = tpu.memref_slice %arg1[%c6_i32_159, %c0_i32_162, %c0_i32_163] : memref<10x128x128xf32, #tpu.memory_space<any>> -> memref<1x128x128xf32, #tpu.memory_space<any>>
    %264 = tpu.memref_squeeze %263 : memref<1x128x128xf32, #tpu.memory_space<any>> -> memref<128x128xf32, #tpu.memory_space<any>>
    %c0_i32_164 = arith.constant 0 : i32
    %c0_i32_165 = arith.constant 0 : i32
    %265 = tpu.memref_slice %arg4[%c0_i32_160, %c0_i32_164, %c0_i32_165] : memref<2x128x128xf32, #tpu.memory_space<vmem>> -> memref<1x128x128xf32, #tpu.memory_space<vmem>>
    %266 = tpu.memref_squeeze %265 : memref<1x128x128xf32, #tpu.memory_space<vmem>> -> memref<128x128xf32, #tpu.memory_space<vmem>>
    %267 = tpu.memref_slice %arg5[%c0_i32_161] : memref<2x!tpu.dma_semaphore, #tpu.memory_space<semaphore_mem>> -> memref<1x!tpu.dma_semaphore, #tpu.memory_space<semaphore_mem>>
    %268 = tpu.memref_squeeze %267 : memref<1x!tpu.dma_semaphore, #tpu.memory_space<semaphore_mem>> -> memref<!tpu.dma_semaphore, #tpu.memory_space<semaphore_mem>>
    tpu.wait_dma2 semaphore(%268 : memref<!tpu.dma_semaphore, #tpu.memory_space<semaphore_mem>>) src(%264 : memref<128x128xf32, #tpu.memory_space<any>>) dst(%266 : memref<128x128xf32, #tpu.memory_space<vmem>>)
    %c7_i32 = arith.constant 7 : i32
    %c1_i32_166 = arith.constant 1 : i32
    %c1_i32_167 = arith.constant 1 : i32
    %c0_i32_168 = arith.constant 0 : i32
    %c0_i32_169 = arith.constant 0 : i32
    %269 = tpu.memref_slice %arg1[%c7_i32, %c0_i32_168, %c0_i32_169] : memref<10x128x128xf32, #tpu.memory_space<any>> -> memref<1x128x128xf32, #tpu.memory_space<any>>
    %270 = tpu.memref_squeeze %269 : memref<1x128x128xf32, #tpu.memory_space<any>> -> memref<128x128xf32, #tpu.memory_space<any>>
    %c0_i32_170 = arith.constant 0 : i32
    %c0_i32_171 = arith.constant 0 : i32
    %271 = tpu.memref_slice %arg4[%c1_i32_166, %c0_i32_170, %c0_i32_171] : memref<2x128x128xf32, #tpu.memory_space<vmem>> -> memref<1x128x128xf32, #tpu.memory_space<vmem>>
    %272 = tpu.memref_squeeze %271 : memref<1x128x128xf32, #tpu.memory_space<vmem>> -> memref<128x128xf32, #tpu.memory_space<vmem>>
    %273 = tpu.memref_slice %arg5[%c1_i32_167] : memref<2x!tpu.dma_semaphore, #tpu.memory_space<semaphore_mem>> -> memref<1x!tpu.dma_semaphore, #tpu.memory_space<semaphore_mem>>
    %274 = tpu.memref_squeeze %273 : memref<1x!tpu.dma_semaphore, #tpu.memory_space<semaphore_mem>> -> memref<!tpu.dma_semaphore, #tpu.memory_space<semaphore_mem>>
    tpu.enqueue_dma source(%270 : memref<128x128xf32, #tpu.memory_space<any>>) target(%272 : memref<128x128xf32, #tpu.memory_space<vmem>>) target_semaphore(%274 : memref<!tpu.dma_semaphore, #tpu.memory_space<semaphore_mem>>)
    %c0_172 = arith.constant 0 : index
    %c0_173 = arith.constant 0 : index
    %c0_174 = arith.constant 0 : index
    %275 = vector.load %arg4[%c0_172, %c0_173, %c0_174] : memref<2x128x128xf32, #tpu.memory_space<vmem>>, vector<1x128x128xf32>
    %276 = vector.shape_cast %275 : vector<1x128x128xf32> to vector<128x128xf32>
    %cst_175 = arith.constant dense<0.000000e+00> : vector<8x128xf32>
    %277 = tpu.matmul %262, %276, %cst_175 {dimension_numbers = #tpu.dot_dimension_numbers<[1], [0], [0], [1], [0, 0, 1, 1], [], []>} : vector<8x128xf32>, vector<128x128xf32>, vector<8x128xf32> -> vector<8x128xf32>
    %c6 = arith.constant 6 : index
    %c0_176 = arith.constant 0 : index
    %c0_177 = arith.constant 0 : index
    %278 = vector.load %arg2[%c6, %c0_176, %c0_177] : memref<10x8x128xf32, #tpu.memory_space<vmem>>, vector<1x8x128xf32>
    %279 = vector.shape_cast %278 : vector<1x8x128xf32> to vector<8x128xf32>
    %280 = vector.extract_strided_slice %279 {offsets = [0, 0], sizes = [1, 128], strides = [1, 1]} : vector<8x128xf32> to vector<1x128xf32>
    %281 = vector.extract_strided_slice %279 {offsets = [1, 0], sizes = [1, 128], strides = [1, 1]} : vector<8x128xf32> to vector<1x128xf32>
    %cst_178 = arith.constant dense<0.000000e+00> : vector<128xf32>
    %282 = vector.multi_reduction <add>, %277, %cst_178 [0] : vector<8x128xf32> to vector<128xf32>
    %283 = vector.shape_cast %282 : vector<128xf32> to vector<1x128xf32>
    %cst_179 = arith.constant 8.000000e+00 : f32
    %284 = vector.broadcast %cst_179 : f32 to vector<1x128xf32>
    %285 = arith.divf %283, %284 : vector<1x128xf32>
    %286 = arith.mulf %277, %277 : vector<8x128xf32>
    %cst_180 = arith.constant dense<0.000000e+00> : vector<128xf32>
    %287 = vector.multi_reduction <add>, %286, %cst_180 [0] : vector<8x128xf32> to vector<128xf32>
    %288 = vector.shape_cast %287 : vector<128xf32> to vector<1x128xf32>
    %cst_181 = arith.constant 8.000000e+00 : f32
    %289 = vector.broadcast %cst_181 : f32 to vector<1x128xf32>
    %290 = arith.divf %288, %289 : vector<1x128xf32>
    %291 = arith.mulf %285, %285 : vector<1x128xf32>
    %292 = arith.subf %290, %291 : vector<1x128xf32>
    %cst_182 = arith.constant 0.000000e+00 : f32
    %293 = vector.broadcast %cst_182 : f32 to vector<1x128xf32>
    %294 = arith.maximumf %292, %293 : vector<1x128xf32>
    %cst_183 = arith.constant 9.99999974E-6 : f32
    %295 = vector.broadcast %cst_183 : f32 to vector<1x128xf32>
    %296 = arith.addf %294, %295 : vector<1x128xf32>
    %297 = math.rsqrt %296 : vector<1x128xf32>
    %298 = arith.mulf %280, %297 : vector<1x128xf32>
    %299 = arith.mulf %285, %298 : vector<1x128xf32>
    %300 = arith.subf %281, %299 : vector<1x128xf32>
    %301 = vector.broadcast %298 : vector<1x128xf32> to vector<8x128xf32>
    %302 = arith.mulf %277, %301 : vector<8x128xf32>
    %303 = vector.broadcast %300 : vector<1x128xf32> to vector<8x128xf32>
    %304 = arith.addf %302, %303 : vector<8x128xf32>
    %cst_184 = arith.constant 0.000000e+00 : f32
    %305 = vector.broadcast %cst_184 : f32 to vector<8x128xf32>
    %306 = arith.maximumf %304, %305 : vector<8x128xf32>
    %c7_i32_185 = arith.constant 7 : i32
    %c1_i32_186 = arith.constant 1 : i32
    %c1_i32_187 = arith.constant 1 : i32
    %c0_i32_188 = arith.constant 0 : i32
    %c0_i32_189 = arith.constant 0 : i32
    %307 = tpu.memref_slice %arg1[%c7_i32_185, %c0_i32_188, %c0_i32_189] : memref<10x128x128xf32, #tpu.memory_space<any>> -> memref<1x128x128xf32, #tpu.memory_space<any>>
    %308 = tpu.memref_squeeze %307 : memref<1x128x128xf32, #tpu.memory_space<any>> -> memref<128x128xf32, #tpu.memory_space<any>>
    %c0_i32_190 = arith.constant 0 : i32
    %c0_i32_191 = arith.constant 0 : i32
    %309 = tpu.memref_slice %arg4[%c1_i32_186, %c0_i32_190, %c0_i32_191] : memref<2x128x128xf32, #tpu.memory_space<vmem>> -> memref<1x128x128xf32, #tpu.memory_space<vmem>>
    %310 = tpu.memref_squeeze %309 : memref<1x128x128xf32, #tpu.memory_space<vmem>> -> memref<128x128xf32, #tpu.memory_space<vmem>>
    %311 = tpu.memref_slice %arg5[%c1_i32_187] : memref<2x!tpu.dma_semaphore, #tpu.memory_space<semaphore_mem>> -> memref<1x!tpu.dma_semaphore, #tpu.memory_space<semaphore_mem>>
    %312 = tpu.memref_squeeze %311 : memref<1x!tpu.dma_semaphore, #tpu.memory_space<semaphore_mem>> -> memref<!tpu.dma_semaphore, #tpu.memory_space<semaphore_mem>>
    tpu.wait_dma2 semaphore(%312 : memref<!tpu.dma_semaphore, #tpu.memory_space<semaphore_mem>>) src(%308 : memref<128x128xf32, #tpu.memory_space<any>>) dst(%310 : memref<128x128xf32, #tpu.memory_space<vmem>>)
    %c8_i32 = arith.constant 8 : i32
    %c0_i32_192 = arith.constant 0 : i32
    %c0_i32_193 = arith.constant 0 : i32
    %c0_i32_194 = arith.constant 0 : i32
    %c0_i32_195 = arith.constant 0 : i32
    %313 = tpu.memref_slice %arg1[%c8_i32, %c0_i32_194, %c0_i32_195] : memref<10x128x128xf32, #tpu.memory_space<any>> -> memref<1x128x128xf32, #tpu.memory_space<any>>
    %314 = tpu.memref_squeeze %313 : memref<1x128x128xf32, #tpu.memory_space<any>> -> memref<128x128xf32, #tpu.memory_space<any>>
    %c0_i32_196 = arith.constant 0 : i32
    %c0_i32_197 = arith.constant 0 : i32
    %315 = tpu.memref_slice %arg4[%c0_i32_192, %c0_i32_196, %c0_i32_197] : memref<2x128x128xf32, #tpu.memory_space<vmem>> -> memref<1x128x128xf32, #tpu.memory_space<vmem>>
    %316 = tpu.memref_squeeze %315 : memref<1x128x128xf32, #tpu.memory_space<vmem>> -> memref<128x128xf32, #tpu.memory_space<vmem>>
    %317 = tpu.memref_slice %arg5[%c0_i32_193] : memref<2x!tpu.dma_semaphore, #tpu.memory_space<semaphore_mem>> -> memref<1x!tpu.dma_semaphore, #tpu.memory_space<semaphore_mem>>
    %318 = tpu.memref_squeeze %317 : memref<1x!tpu.dma_semaphore, #tpu.memory_space<semaphore_mem>> -> memref<!tpu.dma_semaphore, #tpu.memory_space<semaphore_mem>>
    tpu.enqueue_dma source(%314 : memref<128x128xf32, #tpu.memory_space<any>>) target(%316 : memref<128x128xf32, #tpu.memory_space<vmem>>) target_semaphore(%318 : memref<!tpu.dma_semaphore, #tpu.memory_space<semaphore_mem>>)
    %c1_198 = arith.constant 1 : index
    %c0_199 = arith.constant 0 : index
    %c0_200 = arith.constant 0 : index
    %319 = vector.load %arg4[%c1_198, %c0_199, %c0_200] : memref<2x128x128xf32, #tpu.memory_space<vmem>>, vector<1x128x128xf32>
    %320 = vector.shape_cast %319 : vector<1x128x128xf32> to vector<128x128xf32>
    %cst_201 = arith.constant dense<0.000000e+00> : vector<8x128xf32>
    %321 = tpu.matmul %306, %320, %cst_201 {dimension_numbers = #tpu.dot_dimension_numbers<[1], [0], [0], [1], [0, 0, 1, 1], [], []>} : vector<8x128xf32>, vector<128x128xf32>, vector<8x128xf32> -> vector<8x128xf32>
    %c7 = arith.constant 7 : index
    %c0_202 = arith.constant 0 : index
    %c0_203 = arith.constant 0 : index
    %322 = vector.load %arg2[%c7, %c0_202, %c0_203] : memref<10x8x128xf32, #tpu.memory_space<vmem>>, vector<1x8x128xf32>
    %323 = vector.shape_cast %322 : vector<1x8x128xf32> to vector<8x128xf32>
    %324 = vector.extract_strided_slice %323 {offsets = [0, 0], sizes = [1, 128], strides = [1, 1]} : vector<8x128xf32> to vector<1x128xf32>
    %325 = vector.extract_strided_slice %323 {offsets = [1, 0], sizes = [1, 128], strides = [1, 1]} : vector<8x128xf32> to vector<1x128xf32>
    %cst_204 = arith.constant dense<0.000000e+00> : vector<128xf32>
    %326 = vector.multi_reduction <add>, %321, %cst_204 [0] : vector<8x128xf32> to vector<128xf32>
    %327 = vector.shape_cast %326 : vector<128xf32> to vector<1x128xf32>
    %cst_205 = arith.constant 8.000000e+00 : f32
    %328 = vector.broadcast %cst_205 : f32 to vector<1x128xf32>
    %329 = arith.divf %327, %328 : vector<1x128xf32>
    %330 = arith.mulf %321, %321 : vector<8x128xf32>
    %cst_206 = arith.constant dense<0.000000e+00> : vector<128xf32>
    %331 = vector.multi_reduction <add>, %330, %cst_206 [0] : vector<8x128xf32> to vector<128xf32>
    %332 = vector.shape_cast %331 : vector<128xf32> to vector<1x128xf32>
    %cst_207 = arith.constant 8.000000e+00 : f32
    %333 = vector.broadcast %cst_207 : f32 to vector<1x128xf32>
    %334 = arith.divf %332, %333 : vector<1x128xf32>
    %335 = arith.mulf %329, %329 : vector<1x128xf32>
    %336 = arith.subf %334, %335 : vector<1x128xf32>
    %cst_208 = arith.constant 0.000000e+00 : f32
    %337 = vector.broadcast %cst_208 : f32 to vector<1x128xf32>
    %338 = arith.maximumf %336, %337 : vector<1x128xf32>
    %cst_209 = arith.constant 9.99999974E-6 : f32
    %339 = vector.broadcast %cst_209 : f32 to vector<1x128xf32>
    %340 = arith.addf %338, %339 : vector<1x128xf32>
    %341 = math.rsqrt %340 : vector<1x128xf32>
    %342 = arith.mulf %324, %341 : vector<1x128xf32>
    %343 = arith.mulf %329, %342 : vector<1x128xf32>
    %344 = arith.subf %325, %343 : vector<1x128xf32>
    %345 = vector.broadcast %342 : vector<1x128xf32> to vector<8x128xf32>
    %346 = arith.mulf %321, %345 : vector<8x128xf32>
    %347 = vector.broadcast %344 : vector<1x128xf32> to vector<8x128xf32>
    %348 = arith.addf %346, %347 : vector<8x128xf32>
    %cst_210 = arith.constant 0.000000e+00 : f32
    %349 = vector.broadcast %cst_210 : f32 to vector<8x128xf32>
    %350 = arith.maximumf %348, %349 : vector<8x128xf32>
    %c8_i32_211 = arith.constant 8 : i32
    %c0_i32_212 = arith.constant 0 : i32
    %c0_i32_213 = arith.constant 0 : i32
    %c0_i32_214 = arith.constant 0 : i32
    %c0_i32_215 = arith.constant 0 : i32
    %351 = tpu.memref_slice %arg1[%c8_i32_211, %c0_i32_214, %c0_i32_215] : memref<10x128x128xf32, #tpu.memory_space<any>> -> memref<1x128x128xf32, #tpu.memory_space<any>>
    %352 = tpu.memref_squeeze %351 : memref<1x128x128xf32, #tpu.memory_space<any>> -> memref<128x128xf32, #tpu.memory_space<any>>
    %c0_i32_216 = arith.constant 0 : i32
    %c0_i32_217 = arith.constant 0 : i32
    %353 = tpu.memref_slice %arg4[%c0_i32_212, %c0_i32_216, %c0_i32_217] : memref<2x128x128xf32, #tpu.memory_space<vmem>> -> memref<1x128x128xf32, #tpu.memory_space<vmem>>
    %354 = tpu.memref_squeeze %353 : memref<1x128x128xf32, #tpu.memory_space<vmem>> -> memref<128x128xf32, #tpu.memory_space<vmem>>
    %355 = tpu.memref_slice %arg5[%c0_i32_213] : memref<2x!tpu.dma_semaphore, #tpu.memory_space<semaphore_mem>> -> memref<1x!tpu.dma_semaphore, #tpu.memory_space<semaphore_mem>>
    %356 = tpu.memref_squeeze %355 : memref<1x!tpu.dma_semaphore, #tpu.memory_space<semaphore_mem>> -> memref<!tpu.dma_semaphore, #tpu.memory_space<semaphore_mem>>
    tpu.wait_dma2 semaphore(%356 : memref<!tpu.dma_semaphore, #tpu.memory_space<semaphore_mem>>) src(%352 : memref<128x128xf32, #tpu.memory_space<any>>) dst(%354 : memref<128x128xf32, #tpu.memory_space<vmem>>)
    %c9_i32 = arith.constant 9 : i32
    %c1_i32_218 = arith.constant 1 : i32
    %c1_i32_219 = arith.constant 1 : i32
    %c0_i32_220 = arith.constant 0 : i32
    %c0_i32_221 = arith.constant 0 : i32
    %357 = tpu.memref_slice %arg1[%c9_i32, %c0_i32_220, %c0_i32_221] : memref<10x128x128xf32, #tpu.memory_space<any>> -> memref<1x128x128xf32, #tpu.memory_space<any>>
    %358 = tpu.memref_squeeze %357 : memref<1x128x128xf32, #tpu.memory_space<any>> -> memref<128x128xf32, #tpu.memory_space<any>>
    %c0_i32_222 = arith.constant 0 : i32
    %c0_i32_223 = arith.constant 0 : i32
    %359 = tpu.memref_slice %arg4[%c1_i32_218, %c0_i32_222, %c0_i32_223] : memref<2x128x128xf32, #tpu.memory_space<vmem>> -> memref<1x128x128xf32, #tpu.memory_space<vmem>>
    %360 = tpu.memref_squeeze %359 : memref<1x128x128xf32, #tpu.memory_space<vmem>> -> memref<128x128xf32, #tpu.memory_space<vmem>>
    %361 = tpu.memref_slice %arg5[%c1_i32_219] : memref<2x!tpu.dma_semaphore, #tpu.memory_space<semaphore_mem>> -> memref<1x!tpu.dma_semaphore, #tpu.memory_space<semaphore_mem>>
    %362 = tpu.memref_squeeze %361 : memref<1x!tpu.dma_semaphore, #tpu.memory_space<semaphore_mem>> -> memref<!tpu.dma_semaphore, #tpu.memory_space<semaphore_mem>>
    tpu.enqueue_dma source(%358 : memref<128x128xf32, #tpu.memory_space<any>>) target(%360 : memref<128x128xf32, #tpu.memory_space<vmem>>) target_semaphore(%362 : memref<!tpu.dma_semaphore, #tpu.memory_space<semaphore_mem>>)
    %c0_224 = arith.constant 0 : index
    %c0_225 = arith.constant 0 : index
    %c0_226 = arith.constant 0 : index
    %363 = vector.load %arg4[%c0_224, %c0_225, %c0_226] : memref<2x128x128xf32, #tpu.memory_space<vmem>>, vector<1x128x128xf32>
    %364 = vector.shape_cast %363 : vector<1x128x128xf32> to vector<128x128xf32>
    %cst_227 = arith.constant dense<0.000000e+00> : vector<8x128xf32>
    %365 = tpu.matmul %350, %364, %cst_227 {dimension_numbers = #tpu.dot_dimension_numbers<[1], [0], [0], [1], [0, 0, 1, 1], [], []>} : vector<8x128xf32>, vector<128x128xf32>, vector<8x128xf32> -> vector<8x128xf32>
    %c8 = arith.constant 8 : index
    %c0_228 = arith.constant 0 : index
    %c0_229 = arith.constant 0 : index
    %366 = vector.load %arg2[%c8, %c0_228, %c0_229] : memref<10x8x128xf32, #tpu.memory_space<vmem>>, vector<1x8x128xf32>
    %367 = vector.shape_cast %366 : vector<1x8x128xf32> to vector<8x128xf32>
    %368 = vector.extract_strided_slice %367 {offsets = [0, 0], sizes = [1, 128], strides = [1, 1]} : vector<8x128xf32> to vector<1x128xf32>
    %369 = vector.extract_strided_slice %367 {offsets = [1, 0], sizes = [1, 128], strides = [1, 1]} : vector<8x128xf32> to vector<1x128xf32>
    %cst_230 = arith.constant dense<0.000000e+00> : vector<128xf32>
    %370 = vector.multi_reduction <add>, %365, %cst_230 [0] : vector<8x128xf32> to vector<128xf32>
    %371 = vector.shape_cast %370 : vector<128xf32> to vector<1x128xf32>
    %cst_231 = arith.constant 8.000000e+00 : f32
    %372 = vector.broadcast %cst_231 : f32 to vector<1x128xf32>
    %373 = arith.divf %371, %372 : vector<1x128xf32>
    %374 = arith.mulf %365, %365 : vector<8x128xf32>
    %cst_232 = arith.constant dense<0.000000e+00> : vector<128xf32>
    %375 = vector.multi_reduction <add>, %374, %cst_232 [0] : vector<8x128xf32> to vector<128xf32>
    %376 = vector.shape_cast %375 : vector<128xf32> to vector<1x128xf32>
    %cst_233 = arith.constant 8.000000e+00 : f32
    %377 = vector.broadcast %cst_233 : f32 to vector<1x128xf32>
    %378 = arith.divf %376, %377 : vector<1x128xf32>
    %379 = arith.mulf %373, %373 : vector<1x128xf32>
    %380 = arith.subf %378, %379 : vector<1x128xf32>
    %cst_234 = arith.constant 0.000000e+00 : f32
    %381 = vector.broadcast %cst_234 : f32 to vector<1x128xf32>
    %382 = arith.maximumf %380, %381 : vector<1x128xf32>
    %cst_235 = arith.constant 9.99999974E-6 : f32
    %383 = vector.broadcast %cst_235 : f32 to vector<1x128xf32>
    %384 = arith.addf %382, %383 : vector<1x128xf32>
    %385 = math.rsqrt %384 : vector<1x128xf32>
    %386 = arith.mulf %368, %385 : vector<1x128xf32>
    %387 = arith.mulf %373, %386 : vector<1x128xf32>
    %388 = arith.subf %369, %387 : vector<1x128xf32>
    %389 = vector.broadcast %386 : vector<1x128xf32> to vector<8x128xf32>
    %390 = arith.mulf %365, %389 : vector<8x128xf32>
    %391 = vector.broadcast %388 : vector<1x128xf32> to vector<8x128xf32>
    %392 = arith.addf %390, %391 : vector<8x128xf32>
    %cst_236 = arith.constant 0.000000e+00 : f32
    %393 = vector.broadcast %cst_236 : f32 to vector<8x128xf32>
    %394 = arith.maximumf %392, %393 : vector<8x128xf32>
    %c9_i32_237 = arith.constant 9 : i32
    %c1_i32_238 = arith.constant 1 : i32
    %c1_i32_239 = arith.constant 1 : i32
    %c0_i32_240 = arith.constant 0 : i32
    %c0_i32_241 = arith.constant 0 : i32
    %395 = tpu.memref_slice %arg1[%c9_i32_237, %c0_i32_240, %c0_i32_241] : memref<10x128x128xf32, #tpu.memory_space<any>> -> memref<1x128x128xf32, #tpu.memory_space<any>>
    %396 = tpu.memref_squeeze %395 : memref<1x128x128xf32, #tpu.memory_space<any>> -> memref<128x128xf32, #tpu.memory_space<any>>
    %c0_i32_242 = arith.constant 0 : i32
    %c0_i32_243 = arith.constant 0 : i32
    %397 = tpu.memref_slice %arg4[%c1_i32_238, %c0_i32_242, %c0_i32_243] : memref<2x128x128xf32, #tpu.memory_space<vmem>> -> memref<1x128x128xf32, #tpu.memory_space<vmem>>
    %398 = tpu.memref_squeeze %397 : memref<1x128x128xf32, #tpu.memory_space<vmem>> -> memref<128x128xf32, #tpu.memory_space<vmem>>
    %399 = tpu.memref_slice %arg5[%c1_i32_239] : memref<2x!tpu.dma_semaphore, #tpu.memory_space<semaphore_mem>> -> memref<1x!tpu.dma_semaphore, #tpu.memory_space<semaphore_mem>>
    %400 = tpu.memref_squeeze %399 : memref<1x!tpu.dma_semaphore, #tpu.memory_space<semaphore_mem>> -> memref<!tpu.dma_semaphore, #tpu.memory_space<semaphore_mem>>
    tpu.wait_dma2 semaphore(%400 : memref<!tpu.dma_semaphore, #tpu.memory_space<semaphore_mem>>) src(%396 : memref<128x128xf32, #tpu.memory_space<any>>) dst(%398 : memref<128x128xf32, #tpu.memory_space<vmem>>)
    %c1_244 = arith.constant 1 : index
    %c0_245 = arith.constant 0 : index
    %c0_246 = arith.constant 0 : index
    %401 = vector.load %arg4[%c1_244, %c0_245, %c0_246] : memref<2x128x128xf32, #tpu.memory_space<vmem>>, vector<1x128x128xf32>
    %402 = vector.shape_cast %401 : vector<1x128x128xf32> to vector<128x128xf32>
    %cst_247 = arith.constant dense<0.000000e+00> : vector<8x128xf32>
    %403 = tpu.matmul %394, %402, %cst_247 {dimension_numbers = #tpu.dot_dimension_numbers<[1], [0], [0], [1], [0, 0, 1, 1], [], []>} : vector<8x128xf32>, vector<128x128xf32>, vector<8x128xf32> -> vector<8x128xf32>
    %c9 = arith.constant 9 : index
    %c0_248 = arith.constant 0 : index
    %c0_249 = arith.constant 0 : index
    %404 = vector.load %arg2[%c9, %c0_248, %c0_249] : memref<10x8x128xf32, #tpu.memory_space<vmem>>, vector<1x8x128xf32>
    %405 = vector.shape_cast %404 : vector<1x8x128xf32> to vector<8x128xf32>
    %406 = vector.extract_strided_slice %405 {offsets = [0, 0], sizes = [1, 128], strides = [1, 1]} : vector<8x128xf32> to vector<1x128xf32>
    %407 = vector.extract_strided_slice %405 {offsets = [1, 0], sizes = [1, 128], strides = [1, 1]} : vector<8x128xf32> to vector<1x128xf32>
    %cst_250 = arith.constant dense<0.000000e+00> : vector<128xf32>
    %408 = vector.multi_reduction <add>, %403, %cst_250 [0] : vector<8x128xf32> to vector<128xf32>
    %409 = vector.shape_cast %408 : vector<128xf32> to vector<1x128xf32>
    %cst_251 = arith.constant 8.000000e+00 : f32
    %410 = vector.broadcast %cst_251 : f32 to vector<1x128xf32>
    %411 = arith.divf %409, %410 : vector<1x128xf32>
    %412 = arith.mulf %403, %403 : vector<8x128xf32>
    %cst_252 = arith.constant dense<0.000000e+00> : vector<128xf32>
    %413 = vector.multi_reduction <add>, %412, %cst_252 [0] : vector<8x128xf32> to vector<128xf32>
    %414 = vector.shape_cast %413 : vector<128xf32> to vector<1x128xf32>
    %cst_253 = arith.constant 8.000000e+00 : f32
    %415 = vector.broadcast %cst_253 : f32 to vector<1x128xf32>
    %416 = arith.divf %414, %415 : vector<1x128xf32>
    %417 = arith.mulf %411, %411 : vector<1x128xf32>
    %418 = arith.subf %416, %417 : vector<1x128xf32>
    %cst_254 = arith.constant 0.000000e+00 : f32
    %419 = vector.broadcast %cst_254 : f32 to vector<1x128xf32>
    %420 = arith.maximumf %418, %419 : vector<1x128xf32>
    %cst_255 = arith.constant 9.99999974E-6 : f32
    %421 = vector.broadcast %cst_255 : f32 to vector<1x128xf32>
    %422 = arith.addf %420, %421 : vector<1x128xf32>
    %423 = math.rsqrt %422 : vector<1x128xf32>
    %424 = arith.mulf %406, %423 : vector<1x128xf32>
    %425 = arith.mulf %411, %424 : vector<1x128xf32>
    %426 = arith.subf %407, %425 : vector<1x128xf32>
    %427 = vector.broadcast %424 : vector<1x128xf32> to vector<8x128xf32>
    %428 = arith.mulf %403, %427 : vector<8x128xf32>
    %429 = vector.broadcast %426 : vector<1x128xf32> to vector<8x128xf32>
    %430 = arith.addf %428, %429 : vector<8x128xf32>
    %c0_256 = arith.constant 0 : index
    %c0_257 = arith.constant 0 : index
    %431 = vector.load %arg3[%c0_256, %c0_257] : memref<8x256xf32, #tpu.memory_space<vmem>>, vector<8x128xf32>
    tpu.vector_store %arg3[%c0_256, %c0_257], %430 {strides = array<i32>} : memref<8x256xf32, #tpu.memory_space<vmem>>, vector<8x128xf32>,
    %c0_258 = arith.constant 0 : index
    %c128 = arith.constant 128 : index
    %432 = vector.load %arg3[%c0_258, %c128] : memref<8x256xf32, #tpu.memory_space<vmem>>, vector<8x128xf32>
    tpu.vector_store %arg3[%c0_258, %c128], %202 {strides = array<i32>} : memref<8x256xf32, #tpu.memory_space<vmem>>, vector<8x128xf32>,
    return
  }
}

</mosaic_0001>

<llo_original>
// kernel: autoencoder_forward.1
$region0: #{autoencoder_forward.1}
  #allocation0 [shape = 'u32[]', space=smem, size = 0x4, offset = 0x4, fixed_abs, tag = 'smem constant byte address 0x4 - core index']
  #allocation1 [shape = 'u32[144,128]{1,0:T(1,128)}', space=vmem, size = 0x12000, scoped, tag = 'internal scratch']
  #allocation2 [shape = 'f32[2,128,128]{2,1,0:T(8,128)}', space=vmem, size = 0x20000, scoped, tag = 'scratch operand']
  #allocation3 [shape = 's32[2]{0}', space=sflag, size = 0x8, scoped, tag = 'scratch operand']
  #allocation6 [shape = 's32[]', space=sflag, size = 0x4, offset = 0, fixed_abs, tag = 'sflag constant byte address 0x0 - dummy sync flag']
  #allocation7 [shape = 's32[]', space=sflag, size = 0x4, offset = 0, fixed_abs, tag = 'sflag constant byte address 0x0 - dummy sync flag']
  #allocation8 [shape = 'u32[]', space=smem, size = 0x4, offset = 0x44, fixed_abs, tag = 'smem constant byte address 0x44 - assertion arg 0']
  #allocation9 [shape = 'u32[]', space=smem, size = 0x4, offset = 0x48, fixed_abs, tag = 'smem constant byte address 0x48 - assertion arg 1']
  #allocation10 [shape = 's32[]', space=sflag, size = 0x4, offset = 0, fixed_abs, tag = 'sflag constant byte address 0x0 - dummy sync flag']
  #allocation11 [shape = 's32[]', space=sflag, size = 0x4, offset = 0, fixed_abs, tag = 'sflag constant byte address 0x0 - dummy sync flag']
  #allocation12 [shape = 's32[]', space=sflag, size = 0x4, offset = 0, fixed_abs, tag = 'sflag constant byte address 0x0 - dummy sync flag']
  #allocation13 [shape = 's32[]', space=sflag, size = 0x4, offset = 0, fixed_abs, tag = 'sflag constant byte address 0x0 - dummy sync flag']
  #allocation14 [shape = 's32[]', space=sflag, size = 0x4, offset = 0, fixed_abs, tag = 'sflag constant byte address 0x0 - dummy sync flag']
  #allocation15 [shape = 's32[]', space=sflag, size = 0x4, offset = 0, fixed_abs, tag = 'sflag constant byte address 0x0 - dummy sync flag']
  #allocation16 [shape = 's32[]', space=sflag, size = 0x4, offset = 0, fixed_abs, tag = 'sflag constant byte address 0x0 - dummy sync flag']
  #allocation17 [shape = 's32[]', space=sflag, size = 0x4, offset = 0, fixed_abs, tag = 'sflag constant byte address 0x0 - dummy sync flag']
  #allocation18 [shape = 's32[]', space=sflag, size = 0x4, offset = 0, fixed_abs, tag = 'sflag constant byte address 0x0 - dummy sync flag']
  #allocation19 [shape = 's32[]', space=sflag, size = 0x4, offset = 0, fixed_abs, tag = 'sflag constant byte address 0x0 - dummy sync flag']
  #allocation20 [shape = 's32[]', space=sflag, size = 0x4, offset = 0, fixed_abs, tag = 'sflag constant byte address 0x0 - dummy sync flag']
  #allocation21 [shape = 's32[]', space=sflag, size = 0x4, offset = 0, fixed_abs, tag = 'sflag constant byte address 0x0 - dummy sync flag']
  #allocation22 [shape = 's32[]', space=sflag, size = 0x4, offset = 0, fixed_abs, tag = 'sflag constant byte address 0x0 - dummy sync flag']
  #allocation23 [shape = 's32[]', space=sflag, size = 0x4, offset = 0, fixed_abs, tag = 'sflag constant byte address 0x0 - dummy sync flag']
  #allocation24 [shape = 's32[]', space=sflag, size = 0x4, offset = 0, fixed_abs, tag = 'sflag constant byte address 0x0 - dummy sync flag']
  #allocation25 [shape = 's32[]', space=sflag, size = 0x4, offset = 0, fixed_abs, tag = 'sflag constant byte address 0x0 - dummy sync flag']
  #allocation26 [shape = 's32[]', space=sflag, size = 0x4, offset = 0, fixed_abs, tag = 'sflag constant byte address 0x0 - dummy sync flag']
  #allocation27 [shape = 's32[]', space=sflag, size = 0x4, offset = 0, fixed_abs, tag = 'sflag constant byte address 0x0 - dummy sync flag']
  %s0 = inlined_call_operand.vmem [shape: f32[8,128], index: 0, kind: input, shape index: {}]
  %s1 = inlined_call_operand.hbm [shape: f32[10,128,128], index: 1, kind: input, shape index: {}]
  %s2 = inlined_call_operand.hbm [shape: f32[10,8,128], index: 2, kind: input, shape index: {}]
  %s3 = inlined_call_operand.vmem [shape: f32[8,256], index: 3, kind: output, shape index: {}]
  %s4 = sld [smem:[#allocation0]]
  $region62: #{autoencoder_forward.1} parent=0
    _
  %s6 = ssub.s32 1, %s4
  %s7 = scalar_select 0, %s6, %s4
  $region1: #{autoencoder_forward.1} parent=0
    #allocation4 [shape = 'u8[40960]{0}', space=vmem, size = 0xa000, scoped, tag = 'input window, operand 2, single buffered']
    #allocation5 [shape = 's32[1]{0}', space=sflag, size = 0x4, scoped, tag = 'scoped memory for autoencoder_forward.1']
    %8 = vsyncpa [#allocation5], 0
    // Predicated region
    $region2: #{autoencoder_forward.1} parent=1 // pred_check
      _
    $region3: #{autoencoder_forward.1} parent=1 // pred_check_branch
      %10 = sbr.rel (0) target = $region5
    $region4: #{autoencoder_forward.1} parent=1 // pred_region
      _
    $region5: #{autoencoder_forward.1} parent=1 // pred_fallthru
      _
    // Predicated region
    $region6: #{autoencoder_forward.1} parent=1 // pred_check
      _
    $region7: #{autoencoder_forward.1} parent=1 // pred_check_branch
      %12 = sbr.rel (0) target = $region9
    $region8: #{autoencoder_forward.1} parent=1 // pred_region
      %s14 = ssub.s32 1280, 1280
      %15 = vsyncadd [#allocation5], %s14
      %s16 = sshll.u32 [#allocation4], 4
      %s17 = int_to_ptr.vmem [resolvable:$true] %s16
      %22 = dma.hbm_to_vmem [thread:$0]  %s2, 1280, %s17, [#allocation5], 128, 128, 8
    $region9: #{autoencoder_forward.1} parent=1 // pred_fallthru
      _
    // Predicated region
    $region10: #{autoencoder_forward.1} parent=1 // pred_check
      _
    $region11: #{autoencoder_forward.1} parent=1 // pred_check_branch
      %24 = sbr.rel (0) target = $region13
    $region12: #{autoencoder_forward.1} parent=1 // pred_region
      %25 = dma.done [#allocation5], 1280
    $region13: #{autoencoder_forward.1} parent=1 // pred_fallthru
      _
    // Predicated region
    $region14: #{autoencoder_forward.1} parent=1 // pred_check
      _
    $region15: #{autoencoder_forward.1} parent=1 // pred_check_branch
      %27 = sbr.rel target = $region17
    $region16: #{autoencoder_forward.1} parent=1 // pred_region
      %28 = sst [smem:[#allocation8]] [#allocation7]
      %29 = sst [smem:[#allocation9]] [#allocation6]
    $region17: #{autoencoder_forward.1} parent=1 // pred_fallthru
      _
    %31 = shalt.err (0)
    %s33 = sshll.u32 [#allocation2], 4
    %s34 = int_to_ptr.vmem [resolvable:$true] %s33
    %36 = dma.hbm_to_vmem [thread:$0]  %s1, 2048, %s34, [#allocation3]
    %v37 = vld [vmem:[%s0] sm:$0xff]
    %s38 = smul.u32 128, 1
    %s39 = sshll.u32 %s38, 4
    %40 = dma.done [#allocation3], %s39
    %s41 = scalar_lea.hbm %s1, 2048
    %s42 = scalar_lea.vmem [#allocation2], 128
    %s43 = scalar_lea.sflag [#allocation3], 1
    // Predicated region
    $region18: #{autoencoder_forward.1} parent=1 // pred_check
      _
    $region19: #{autoencoder_forward.1} parent=1 // pred_check_branch
      %45 = sbr.rel target = $region21
    $region20: #{autoencoder_forward.1} parent=1 // pred_region
      %46 = sst [smem:[#allocation8]] [#allocation11]
      %47 = sst [smem:[#allocation9]] [#allocation10]
    $region21: #{autoencoder_forward.1} parent=1 // pred_fallthru
      _
    %49 = shalt.err (0)
    %s51 = sshll.u32 %s42, 4
    %s52 = int_to_ptr.vmem [resolvable:$true] %s51
    %54 = dma.hbm_to_vmem [thread:$0]  %s41, 2048, %s52, %s43
    %v55 = vld [vmem:[#allocation2] sm:$0xff]
    %v56 = vld [vmem:[#allocation2 + $0x8] sm:$0xff]
    %v57 = vld [vmem:[#allocation2 + $0x10] sm:$0xff]
    %v58 = vld [vmem:[#allocation2 + $0x18] sm:$0xff]
    %v59 = vld [vmem:[#allocation2 + $0x20] sm:$0xff]
    %v60 = vld [vmem:[#allocation2 + $0x28] sm:$0xff]
    %v61 = vld [vmem:[#allocation2 + $0x30] sm:$0xff]
    %v62 = vld [vmem:[#allocation2 + $0x38] sm:$0xff]
    %v63 = vld [vmem:[#allocation2 + $0x40] sm:$0xff]
    %v64 = vld [vmem:[#allocation2 + $0x48] sm:$0xff]
    %v65 = vld [vmem:[#allocation2 + $0x50] sm:$0xff]
    %v66 = vld [vmem:[#allocation2 + $0x58] sm:$0xff]
    %v67 = vld [vmem:[#allocation2 + $0x60] sm:$0xff]
    %v68 = vld [vmem:[#allocation2 + $0x68] sm:$0xff]
    %v69 = vld [vmem:[#allocation2 + $0x70] sm:$0xff]
    %v70 = vld [vmem:[#allocation2 + $0x78] sm:$0xff]
    %71 = vmatprep.subr.mxu0 0.0
    %72 = vmatpush1.msra.mxu0 %v55
    %73 = vmatprep.subr.mxu0 0.0
    %74 = vmatpush1.msra.mxu0 %v56
    %75 = vmatprep.subr.mxu0 0.0
    %76 = vmatpush1.msra.mxu0 %v57
    %77 = vmatprep.subr.mxu0 0.0
    %78 = vmatpush1.msra.mxu0 %v58
    %79 = vmatprep.subr.mxu0 0.0
    %80 = vmatpush1.msra.mxu0 %v59
    %81 = vmatprep.subr.mxu0 0.0
    %82 = vmatpush1.msra.mxu0 %v60
    %83 = vmatprep.subr.mxu0 0.0
    %84 = vmatpush1.msra.mxu0 %v61
    %85 = vmatprep.subr.mxu0 0.0
    %86 = vmatpush1.msra.mxu0 %v62
    %87 = vmatprep.subr.mxu0 0.0
    %88 = vmatpush1.msra.mxu0 %v63
    %89 = vmatprep.subr.mxu0 0.0
    %90 = vmatpush1.msra.mxu0 %v64
    %91 = vmatprep.subr.mxu0 0.0
    %92 = vmatpush1.msra.mxu0 %v65
    %93 = vmatprep.subr.mxu0 0.0
    %94 = vmatpush1.msra.mxu0 %v66
    %95 = vmatprep.subr.mxu0 0.0
    %96 = vmatpush1.msra.mxu0 %v67
    %97 = vmatprep.subr.mxu0 0.0
    %98 = vmatpush1.msra.mxu0 %v68
    %99 = vmatprep.subr.mxu0 0.0
    %100 = vmatpush1.msra.mxu0 %v69
    %101 = vmatprep.subr.mxu0 0.0
    %102 = vmatpush1.msra.mxu0 %v70
    %103 = vmatprep.subr.mxu0 0.0
    %104 = vmatpush1.msra.mxu0 0.0
    %105 = vmatprep.subr.mxu0 0.0
    %106 = vmatpush1.msra.mxu0 0.0
    %107 = vmatprep.subr.mxu0 0.0
    %108 = vmatpush1.msra.mxu0 0.0
    %109 = vmatprep.subr.mxu0 0.0
    %110 = vmatpush1.msra.mxu0 0.0
    %111 = vmatprep.subr.mxu0 0.0
    %112 = vmatpush1.msra.mxu0 0.0
    %113 = vmatprep.subr.mxu0 0.0
    %114 = vmatpush1.msra.mxu0 0.0
    %115 = vmatprep.subr.mxu0 0.0
    %116 = vmatpush1.msra.mxu0 0.0
    %117 = vmatprep.subr.mxu0 0.0
    %118 = vmatpush1.msra.mxu0 0.0
    %119 = vmatprep.subr.mxu0 0.0
    %120 = vmatpush1.msra.mxu0 0.0
    %121 = vmatprep.subr.mxu0 0.0
    %122 = vmatpush1.msra.mxu0 0.0
    %123 = vmatprep.subr.mxu0 0.0
    %124 = vmatpush1.msra.mxu0 0.0
    %125 = vmatprep.subr.mxu0 0.0
    %126 = vmatpush1.msra.mxu0 0.0
    %127 = vmatprep.subr.mxu0 0.0
    %128 = vmatpush1.msra.mxu0 0.0
    %129 = vmatprep.subr.mxu0 0.0
    %130 = vmatpush1.msra.mxu0 0.0
    %131 = vmatprep.subr.mxu0 0.0
    %132 = vmatpush1.msra.mxu0 0.0
    %133 = vmatprep.subr.mxu0 0.0
    %134 = vmatpush1.msra.mxu0 0.0
    %135 = vmatprep.mubr.f32.mxu0 0.0
    %136 = vmatmul.mubr.f32.gmra.mrb[0].mxu0 %v37
    %v137 = vpop.f32.mrb[0].mxu0
    %v138 = vadd.f32 0.0, %v137
    %v139 = vpop.f32.mrb[0].mxu0
    %140 = vdwg.mxu0
    %v141 = vld [vmem:[#allocation4] sm:$0xff]
    %v142 = vrot.slane %v138, 4
    %v143 = vadd.f32 %v138, %v142
    %v144 = vrot.slane %v143, 2
    %v145 = vadd.f32 %v143, %v144
    %v146 = vrot.slane %v145, 1
    %v147 = vadd.f32 %v145, %v146
    %v148 = vrcp.pop 8.0
    %v149 = vmul.f32 %v147, %v148
    %v150 = vmul.f32 %v138, %v138
    %v151 = vrot.slane %v150, 4
    %v152 = vadd.f32 %v150, %v151
    %v153 = vrot.slane %v152, 2
    %v154 = vadd.f32 %v152, %v153
    %v155 = vrot.slane %v154, 1
    %v156 = vadd.f32 %v154, %v155
    %v157 = vmul.f32 %v156, %v148
    %v158 = vmul.f32 %v149, %v149
    %v159 = vsub.f32 %v157, %v158
    %v160 = vmax.f32 %v159, 0.0
    %v161 = vadd.f32 %v160, 1e-05
    %v162 = vrsqrt.pop %v161
    %v163 = vmul.f32 %v141, %v162
    %v164 = vmul.f32 %v149, %v163
    %v166 = vrot.slane %v164, 7
    %v168 = vsub.f32 %v141, %v166
    %v169 = vlaneseq
    %v170 = vshrl.u32 %v169, 7
    %v171 = vsub.s32 0, %v170
    %v172 = vrot.slane %v163, %v171
    %v173 = vmul.f32 %v138, %v172
    %v174 = vlaneseq
    %v175 = vshrl.u32 %v174, 7
    %v176 = vsub.s32 1, %v175
    %v177 = vrot.slane %v168, %v176
    %v178 = vadd.f32 %v173, %v177
    %v179 = vmax.f32 %v178, 0.0
    %s180 = sshll.u32 %s38, 4
    %181 = dma.done %s43, %s180
    %s182 = scalar_lea.hbm %s1, 4096
    // Predicated region
    $region22: #{autoencoder_forward.1} parent=1 // pred_check
      _
    $region23: #{autoencoder_forward.1} parent=1 // pred_check_branch
      %184 = sbr.rel target = $region25
    $region24: #{autoencoder_forward.1} parent=1 // pred_region
      %185 = sst [smem:[#allocation8]] [#allocation13]
      %186 = sst [smem:[#allocation9]] [#allocation12]
    $region25: #{autoencoder_forward.1} parent=1 // pred_fallthru
      _
    %188 = shalt.err (0)
    %s190 = sshll.u32 [#allocation2], 4
    %s191 = int_to_ptr.vmem [resolvable:$true] %s190
    %193 = dma.hbm_to_vmem [thread:$0]  %s182, 2048, %s191, [#allocation3]
    %v194 = vld [vmem:[%s42] sm:$0xff]
    %v195 = vld [vmem:[%s42 + $0x8] sm:$0xff]
    %v196 = vld [vmem:[%s42 + $0x10] sm:$0xff]
    %v197 = vld [vmem:[%s42 + $0x18] sm:$0xff]
    %v198 = vld [vmem:[%s42 + $0x20] sm:$0xff]
    %v199 = vld [vmem:[%s42 + $0x28] sm:$0xff]
    %v200 = vld [vmem:[%s42 + $0x30] sm:$0xff]
    %v201 = vld [vmem:[%s42 + $0x38] sm:$0xff]
    %v202 = vld [vmem:[%s42 + $0x40] sm:$0xff]
    %v203 = vld [vmem:[%s42 + $0x48] sm:$0xff]
    %v204 = vld [vmem:[%s42 + $0x50] sm:$0xff]
    %v205 = vld [vmem:[%s42 + $0x58] sm:$0xff]
    %v206 = vld [vmem:[%s42 + $0x60] sm:$0xff]
    %v207 = vld [vmem:[%s42 + $0x68] sm:$0xff]
    %v208 = vld [vmem:[%s42 + $0x70] sm:$0xff]
    %v209 = vld [vmem:[%s42 + $0x78] sm:$0xff]
    %210 = vmatprep.subr.mxu0 0.0
    %211 = vmatpush1.msra.mxu0 %v194
    %212 = vmatprep.subr.mxu0 0.0
    %213 = vmatpush1.msra.mxu0 %v195
    %214 = vmatprep.subr.mxu0 0.0
    %215 = vmatpush1.msra.mxu0 %v196
    %216 = vmatprep.subr.mxu0 0.0
    %217 = vmatpush1.msra.mxu0 %v197
    %218 = vmatprep.subr.mxu0 0.0
    %219 = vmatpush1.msra.mxu0 %v198
    %220 = vmatprep.subr.mxu0 0.0
    %221 = vmatpush1.msra.mxu0 %v199
    %222 = vmatprep.subr.mxu0 0.0
    %223 = vmatpush1.msra.mxu0 %v200
    %224 = vmatprep.subr.mxu0 0.0
    %225 = vmatpush1.msra.mxu0 %v201
    %226 = vmatprep.subr.mxu0 0.0
    %227 = vmatpush1.msra.mxu0 %v202
    %228 = vmatprep.subr.mxu0 0.0
    %229 = vmatpush1.msra.mxu0 %v203
    %230 = vmatprep.subr.mxu0 0.0
    %231 = vmatpush1.msra.mxu0 %v204
    %232 = vmatprep.subr.mxu0 0.0
    %233 = vmatpush1.msra.mxu0 %v205
    %234 = vmatprep.subr.mxu0 0.0
    %235 = vmatpush1.msra.mxu0 %v206
    %236 = vmatprep.subr.mxu0 0.0
    %237 = vmatpush1.msra.mxu0 %v207
    %238 = vmatprep.subr.mxu0 0.0
    %239 = vmatpush1.msra.mxu0 %v208
    %240 = vmatprep.subr.mxu0 0.0
    %241 = vmatpush1.msra.mxu0 %v209
    %242 = vmatprep.subr.mxu0 0.0
    %243 = vmatpush1.msra.mxu0 0.0
    %244 = vmatprep.subr.mxu0 0.0
    %245 = vmatpush1.msra.mxu0 0.0
    %246 = vmatprep.subr.mxu0 0.0
    %247 = vmatpush1.msra.mxu0 0.0
    %248 = vmatprep.subr.mxu0 0.0
    %249 = vmatpush1.msra.mxu0 0.0
    %250 = vmatprep.subr.mxu0 0.0
    %251 = vmatpush1.msra.mxu0 0.0
    %252 = vmatprep.subr.mxu0 0.0
    %253 = vmatpush1.msra.mxu0 0.0
    %254 = vmatprep.subr.mxu0 0.0
    %255 = vmatpush1.msra.mxu0 0.0
    %256 = vmatprep.subr.mxu0 0.0
    %257 = vmatpush1.msra.mxu0 0.0
    %258 = vmatprep.subr.mxu0 0.0
    %259 = vmatpush1.msra.mxu0 0.0
    %260 = vmatprep.subr.mxu0 0.0
    %261 = vmatpush1.msra.mxu0 0.0
    %262 = vmatprep.subr.mxu0 0.0
    %263 = vmatpush1.msra.mxu0 0.0
    %264 = vmatprep.subr.mxu0 0.0
    %265 = vmatpush1.msra.mxu0 0.0
    %266 = vmatprep.subr.mxu0 0.0
    %267 = vmatpush1.msra.mxu0 0.0
    %268 = vmatprep.subr.mxu0 0.0
    %269 = vmatpush1.msra.mxu0 0.0
    %270 = vmatprep.subr.mxu0 0.0
    %271 = vmatpush1.msra.mxu0 0.0
    %272 = vmatprep.subr.mxu0 0.0
    %273 = vmatpush1.msra.mxu0 0.0
    %274 = vmatprep.mubr.f32.mxu0 0.0
    %275 = vmatmul.mubr.f32.gmra.mrb[0].mxu0 %v179
    %v276 = vpop.f32.mrb[0].mxu0
    %v277 = vadd.f32 0.0, %v276
    %v278 = vpop.f32.mrb[0].mxu0
    %279 = vdwg.mxu0
    %s280 = scalar_lea.vmem [#allocation4], 8
    %v281 = vld [vmem:[%s280] sm:$0xff]
    %v282 = vrot.slane %v277, 4
    %v283 = vadd.f32 %v277, %v282
    %v284 = vrot.slane %v283, 2
    %v285 = vadd.f32 %v283, %v284
    %v286 = vrot.slane %v285, 1
    %v287 = vadd.f32 %v285, %v286
    %v288 = vmul.f32 %v287, %v148
    %v289 = vmul.f32 %v277, %v277
    %v290 = vrot.slane %v289, 4
    %v291 = vadd.f32 %v289, %v290
    %v292 = vrot.slane %v291, 2
    %v293 = vadd.f32 %v291, %v292
    %v294 = vrot.slane %v293, 1
    %v295 = vadd.f32 %v293, %v294
    %v296 = vmul.f32 %v295, %v148
    %v297 = vmul.f32 %v288, %v288
    %v298 = vsub.f32 %v296, %v297
    %v299 = vmax.f32 %v298, 0.0
    %v300 = vadd.f32 %v299, 1e-05
    %v301 = vrsqrt.pop %v300
    %v302 = vmul.f32 %v281, %v301
    %v303 = vmul.f32 %v288, %v302
    %v305 = vrot.slane %v303, 7
    %v307 = vsub.f32 %v281, %v305
    %v308 = vlaneseq
    %v309 = vshrl.u32 %v308, 7
    %v310 = vsub.s32 0, %v309
    %v311 = vrot.slane %v302, %v310
    %v312 = vmul.f32 %v277, %v311
    %v313 = vlaneseq
    %v314 = vshrl.u32 %v313, 7
    %v315 = vsub.s32 1, %v314
    %v316 = vrot.slane %v307, %v315
    %v317 = vadd.f32 %v312, %v316
    %v318 = vmax.f32 %v317, 0.0
    %s319 = sshll.u32 %s38, 4
    %320 = dma.done [#allocation3], %s319
    %s321 = scalar_lea.hbm %s1, 6144
    // Predicated region
    $region26: #{autoencoder_forward.1} parent=1 // pred_check
      _
    $region27: #{autoencoder_forward.1} parent=1 // pred_check_branch
      %323 = sbr.rel target = $region29
    $region28: #{autoencoder_forward.1} parent=1 // pred_region
      %324 = sst [smem:[#allocation8]] [#allocation15]
      %325 = sst [smem:[#allocation9]] [#allocation14]
    $region29: #{autoencoder_forward.1} parent=1 // pred_fallthru
      _
    %327 = shalt.err (0)
    %s329 = sshll.u32 %s42, 4
    %s330 = int_to_ptr.vmem [resolvable:$true] %s329
    %332 = dma.hbm_to_vmem [thread:$0]  %s321, 2048, %s330, %s43
    %v333 = vld [vmem:[#allocation2] sm:$0xff]
    %v334 = vld [vmem:[#allocation2 + $0x8] sm:$0xff]
    %v335 = vld [vmem:[#allocation2 + $0x10] sm:$0xff]
    %v336 = vld [vmem:[#allocation2 + $0x18] sm:$0xff]
    %v337 = vld [vmem:[#allocation2 + $0x20] sm:$0xff]
    %v338 = vld [vmem:[#allocation2 + $0x28] sm:$0xff]
    %v339 = vld [vmem:[#allocation2 + $0x30] sm:$0xff]
    %v340 = vld [vmem:[#allocation2 + $0x38] sm:$0xff]
    %v341 = vld [vmem:[#allocation2 + $0x40] sm:$0xff]
    %v342 = vld [vmem:[#allocation2 + $0x48] sm:$0xff]
    %v343 = vld [vmem:[#allocation2 + $0x50] sm:$0xff]
    %v344 = vld [vmem:[#allocation2 + $0x58] sm:$0xff]
    %v345 = vld [vmem:[#allocation2 + $0x60] sm:$0xff]
    %v346 = vld [vmem:[#allocation2 + $0x68] sm:$0xff]
    %v347 = vld [vmem:[#allocation2 + $0x70] sm:$0xff]
    %v348 = vld [vmem:[#allocation2 + $0x78] sm:$0xff]
    %349 = vmatprep.subr.mxu0 0.0
    %350 = vmatpush1.msra.mxu0 %v333
    %351 = vmatprep.subr.mxu0 0.0
    %352 = vmatpush1.msra.mxu0 %v334
    %353 = vmatprep.subr.mxu0 0.0
    %354 = vmatpush1.msra.mxu0 %v335
    %355 = vmatprep.subr.mxu0 0.0
    %356 = vmatpush1.msra.mxu0 %v336
    %357 = vmatprep.subr.mxu0 0.0
    %358 = vmatpush1.msra.mxu0 %v337
    %359 = vmatprep.subr.mxu0 0.0
    %360 = vmatpush1.msra.mxu0 %v338
    %361 = vmatprep.subr.mxu0 0.0
    %362 = vmatpush1.msra.mxu0 %v339
    %363 = vmatprep.subr.mxu0 0.0
    %364 = vmatpush1.msra.mxu0 %v340
    %365 = vmatprep.subr.mxu0 0.0
    %366 = vmatpush1.msra.mxu0 %v341
    %367 = vmatprep.subr.mxu0 0.0
    %368 = vmatpush1.msra.mxu0 %v342
    %369 = vmatprep.subr.mxu0 0.0
    %370 = vmatpush1.msra.mxu0 %v343
    %371 = vmatprep.subr.mxu0 0.0
    %372 = vmatpush1.msra.mxu0 %v344
    %373 = vmatprep.subr.mxu0 0.0
    %374 = vmatpush1.msra.mxu0 %v345
    %375 = vmatprep.subr.mxu0 0.0
    %376 = vmatpush1.msra.mxu0 %v346
    %377 = vmatprep.subr.mxu0 0.0
    %378 = vmatpush1.msra.mxu0 %v347
    %379 = vmatprep.subr.mxu0 0.0
    %380 = vmatpush1.msra.mxu0 %v348
    %381 = vmatprep.subr.mxu0 0.0
    %382 = vmatpush1.msra.mxu0 0.0
    %383 = vmatprep.subr.mxu0 0.0
    %384 = vmatpush1.msra.mxu0 0.0
    %385 = vmatprep.subr.mxu0 0.0
    %386 = vmatpush1.msra.mxu0 0.0
    %387 = vmatprep.subr.mxu0 0.0
    %388 = vmatpush1.msra.mxu0 0.0
    %389 = vmatprep.subr.mxu0 0.0
    %390 = vmatpush1.msra.mxu0 0.0
    %391 = vmatprep.subr.mxu0 0.0
    %392 = vmatpush1.msra.mxu0 0.0
    %393 = vmatprep.subr.mxu0 0.0
    %394 = vmatpush1.msra.mxu0 0.0
    %395 = vmatprep.subr.mxu0 0.0
    %396 = vmatpush1.msra.mxu0 0.0
    %397 = vmatprep.subr.mxu0 0.0
    %398 = vmatpush1.msra.mxu0 0.0
    %399 = vmatprep.subr.mxu0 0.0
    %400 = vmatpush1.msra.mxu0 0.0
    %401 = vmatprep.subr.mxu0 0.0
    %402 = vmatpush1.msra.mxu0 0.0
    %403 = vmatprep.subr.mxu0 0.0
    %404 = vmatpush1.msra.mxu0 0.0
    %405 = vmatprep.subr.mxu0 0.0
    %406 = vmatpush1.msra.mxu0 0.0
    %407 = vmatprep.subr.mxu0 0.0
    %408 = vmatpush1.msra.mxu0 0.0
    %409 = vmatprep.subr.mxu0 0.0
    %410 = vmatpush1.msra.mxu0 0.0
    %411 = vmatprep.subr.mxu0 0.0
    %412 = vmatpush1.msra.mxu0 0.0
    %413 = vmatprep.mubr.f32.mxu0 0.0
    %414 = vmatmul.mubr.f32.gmra.mrb[0].mxu0 %v318
    %v415 = vpop.f32.mrb[0].mxu0
    %v416 = vadd.f32 0.0, %v415
    %v417 = vpop.f32.mrb[0].mxu0
    %418 = vdwg.mxu0
    %s419 = scalar_lea.vmem [#allocation4], 16
    %v420 = vld [vmem:[%s419] sm:$0xff]
    %v421 = vrot.slane %v416, 4
    %v422 = vadd.f32 %v416, %v421
    %v423 = vrot.slane %v422, 2
    %v424 = vadd.f32 %v422, %v423
    %v425 = vrot.slane %v424, 1
    %v426 = vadd.f32 %v424, %v425
    %v427 = vmul.f32 %v426, %v148
    %v428 = vmul.f32 %v416, %v416
    %v429 = vrot.slane %v428, 4
    %v430 = vadd.f32 %v428, %v429
    %v431 = vrot.slane %v430, 2
    %v432 = vadd.f32 %v430, %v431
    %v433 = vrot.slane %v432, 1
    %v434 = vadd.f32 %v432, %v433
    %v435 = vmul.f32 %v434, %v148
    %v436 = vmul.f32 %v427, %v427
    %v437 = vsub.f32 %v435, %v436
    %v438 = vmax.f32 %v437, 0.0
    %v439 = vadd.f32 %v438, 1e-05
    %v440 = vrsqrt.pop %v439
    %v441 = vmul.f32 %v420, %v440
    %v442 = vmul.f32 %v427, %v441
    %v444 = vrot.slane %v442, 7
    %v446 = vsub.f32 %v420, %v444
    %v447 = vlaneseq
    %v448 = vshrl.u32 %v447, 7
    %v449 = vsub.s32 0, %v448
    %v450 = vrot.slane %v441, %v449
    %v451 = vmul.f32 %v416, %v450
    %v452 = vlaneseq
    %v453 = vshrl.u32 %v452, 7
    %v454 = vsub.s32 1, %v453
    %v455 = vrot.slane %v446, %v454
    %v456 = vadd.f32 %v451, %v455
    %v457 = vmax.f32 %v456, 0.0
    %s458 = sshll.u32 %s38, 4
    %459 = dma.done %s43, %s458
    %s460 = scalar_lea.hbm %s1, 8192
    // Predicated region
    $region30: #{autoencoder_forward.1} parent=1 // pred_check
      _
    $region31: #{autoencoder_forward.1} parent=1 // pred_check_branch
      %462 = sbr.rel target = $region33
    $region32: #{autoencoder_forward.1} parent=1 // pred_region
      %463 = sst [smem:[#allocation8]] [#allocation17]
      %464 = sst [smem:[#allocation9]] [#allocation16]
    $region33: #{autoencoder_forward.1} parent=1 // pred_fallthru
      _
    %466 = shalt.err (0)
    %s468 = sshll.u32 [#allocation2], 4
    %s469 = int_to_ptr.vmem [resolvable:$true] %s468
    %471 = dma.hbm_to_vmem [thread:$0]  %s460, 2048, %s469, [#allocation3]
    %v472 = vld [vmem:[%s42] sm:$0xff]
    %v473 = vld [vmem:[%s42 + $0x8] sm:$0xff]
    %v474 = vld [vmem:[%s42 + $0x10] sm:$0xff]
    %v475 = vld [vmem:[%s42 + $0x18] sm:$0xff]
    %v476 = vld [vmem:[%s42 + $0x20] sm:$0xff]
    %v477 = vld [vmem:[%s42 + $0x28] sm:$0xff]
    %v478 = vld [vmem:[%s42 + $0x30] sm:$0xff]
    %v479 = vld [vmem:[%s42 + $0x38] sm:$0xff]
    %v480 = vld [vmem:[%s42 + $0x40] sm:$0xff]
    %v481 = vld [vmem:[%s42 + $0x48] sm:$0xff]
    %v482 = vld [vmem:[%s42 + $0x50] sm:$0xff]
    %v483 = vld [vmem:[%s42 + $0x58] sm:$0xff]
    %v484 = vld [vmem:[%s42 + $0x60] sm:$0xff]
    %v485 = vld [vmem:[%s42 + $0x68] sm:$0xff]
    %v486 = vld [vmem:[%s42 + $0x70] sm:$0xff]
    %v487 = vld [vmem:[%s42 + $0x78] sm:$0xff]
    %488 = vmatprep.subr.mxu0 0.0
    %489 = vmatpush1.msra.mxu0 %v472
    %490 = vmatprep.subr.mxu0 0.0
    %491 = vmatpush1.msra.mxu0 %v473
    %492 = vmatprep.subr.mxu0 0.0
    %493 = vmatpush1.msra.mxu0 %v474
    %494 = vmatprep.subr.mxu0 0.0
    %495 = vmatpush1.msra.mxu0 %v475
    %496 = vmatprep.subr.mxu0 0.0
    %497 = vmatpush1.msra.mxu0 %v476
    %498 = vmatprep.subr.mxu0 0.0
    %499 = vmatpush1.msra.mxu0 %v477
    %500 = vmatprep.subr.mxu0 0.0
    %501 = vmatpush1.msra.mxu0 %v478
    %502 = vmatprep.subr.mxu0 0.0
    %503 = vmatpush1.msra.mxu0 %v479
    %504 = vmatprep.subr.mxu0 0.0
    %505 = vmatpush1.msra.mxu0 %v480
    %506 = vmatprep.subr.mxu0 0.0
    %507 = vmatpush1.msra.mxu0 %v481
    %508 = vmatprep.subr.mxu0 0.0
    %509 = vmatpush1.msra.mxu0 %v482
    %510 = vmatprep.subr.mxu0 0.0
    %511 = vmatpush1.msra.mxu0 %v483
    %512 = vmatprep.subr.mxu0 0.0
    %513 = vmatpush1.msra.mxu0 %v484
    %514 = vmatprep.subr.mxu0 0.0
    %515 = vmatpush1.msra.mxu0 %v485
    %516 = vmatprep.subr.mxu0 0.0
    %517 = vmatpush1.msra.mxu0 %v486
    %518 = vmatprep.subr.mxu0 0.0
    %519 = vmatpush1.msra.mxu0 %v487
    %520 = vmatprep.subr.mxu0 0.0
    %521 = vmatpush1.msra.mxu0 0.0
    %522 = vmatprep.subr.mxu0 0.0
    %523 = vmatpush1.msra.mxu0 0.0
    %524 = vmatprep.subr.mxu0 0.0
    %525 = vmatpush1.msra.mxu0 0.0
    %526 = vmatprep.subr.mxu0 0.0
    %527 = vmatpush1.msra.mxu0 0.0
    %528 = vmatprep.subr.mxu0 0.0
    %529 = vmatpush1.msra.mxu0 0.0
    %530 = vmatprep.subr.mxu0 0.0
    %531 = vmatpush1.msra.mxu0 0.0
    %532 = vmatprep.subr.mxu0 0.0
    %533 = vmatpush1.msra.mxu0 0.0
    %534 = vmatprep.subr.mxu0 0.0
    %535 = vmatpush1.msra.mxu0 0.0
    %536 = vmatprep.subr.mxu0 0.0
    %537 = vmatpush1.msra.mxu0 0.0
    %538 = vmatprep.subr.mxu0 0.0
    %539 = vmatpush1.msra.mxu0 0.0
    %540 = vmatprep.subr.mxu0 0.0
    %541 = vmatpush1.msra.mxu0 0.0
    %542 = vmatprep.subr.mxu0 0.0
    %543 = vmatpush1.msra.mxu0 0.0
    %544 = vmatprep.subr.mxu0 0.0
    %545 = vmatpush1.msra.mxu0 0.0
    %546 = vmatprep.subr.mxu0 0.0
    %547 = vmatpush1.msra.mxu0 0.0
    %548 = vmatprep.subr.mxu0 0.0
    %549 = vmatpush1.msra.mxu0 0.0
    %550 = vmatprep.subr.mxu0 0.0
    %551 = vmatpush1.msra.mxu0 0.0
    %552 = vmatprep.mubr.f32.mxu0 0.0
    %553 = vmatmul.mubr.f32.gmra.mrb[0].mxu0 %v457
    %v554 = vpop.f32.mrb[0].mxu0
    %v555 = vadd.f32 0.0, %v554
    %v556 = vpop.f32.mrb[0].mxu0
    %557 = vdwg.mxu0
    %s558 = scalar_lea.vmem [#allocation4], 24
    %v559 = vld [vmem:[%s558] sm:$0xff]
    %v560 = vrot.slane %v555, 4
    %v561 = vadd.f32 %v555, %v560
    %v562 = vrot.slane %v561, 2
    %v563 = vadd.f32 %v561, %v562
    %v564 = vrot.slane %v563, 1
    %v565 = vadd.f32 %v563, %v564
    %v566 = vmul.f32 %v565, %v148
    %v567 = vmul.f32 %v555, %v555
    %v568 = vrot.slane %v567, 4
    %v569 = vadd.f32 %v567, %v568
    %v570 = vrot.slane %v569, 2
    %v571 = vadd.f32 %v569, %v570
    %v572 = vrot.slane %v571, 1
    %v573 = vadd.f32 %v571, %v572
    %v574 = vmul.f32 %v573, %v148
    %v575 = vmul.f32 %v566, %v566
    %v576 = vsub.f32 %v574, %v575
    %v577 = vmax.f32 %v576, 0.0
    %v578 = vadd.f32 %v577, 1e-05
    %v579 = vrsqrt.pop %v578
    %v580 = vmul.f32 %v559, %v579
    %v581 = vmul.f32 %v566, %v580
    %v583 = vrot.slane %v581, 7
    %v585 = vsub.f32 %v559, %v583
    %v586 = vlaneseq
    %v587 = vshrl.u32 %v586, 7
    %v588 = vsub.s32 0, %v587
    %v589 = vrot.slane %v580, %v588
    %v590 = vmul.f32 %v555, %v589
    %v591 = vlaneseq
    %v592 = vshrl.u32 %v591, 7
    %v593 = vsub.s32 1, %v592
    %v594 = vrot.slane %v585, %v593
    %v595 = vadd.f32 %v590, %v594
    %v596 = vmax.f32 %v595, 0.0
    %s597 = sshll.u32 %s38, 4
    %598 = dma.done [#allocation3], %s597
    %s599 = scalar_lea.hbm %s1, 10240
    // Predicated region
    $region34: #{autoencoder_forward.1} parent=1 // pred_check
      _
    $region35: #{autoencoder_forward.1} parent=1 // pred_check_branch
      %601 = sbr.rel target = $region37
    $region36: #{autoencoder_forward.1} parent=1 // pred_region
      %602 = sst [smem:[#allocation8]] [#allocation19]
      %603 = sst [smem:[#allocation9]] [#allocation18]
    $region37: #{autoencoder_forward.1} parent=1 // pred_fallthru
      _
    %605 = shalt.err (0)
    %s607 = sshll.u32 %s42, 4
    %s608 = int_to_ptr.vmem [resolvable:$true] %s607
    %610 = dma.hbm_to_vmem [thread:$0]  %s599, 2048, %s608, %s43
    %v611 = vld [vmem:[#allocation2] sm:$0xff]
    %v612 = vld [vmem:[#allocation2 + $0x8] sm:$0xff]
    %v613 = vld [vmem:[#allocation2 + $0x10] sm:$0xff]
    %v614 = vld [vmem:[#allocation2 + $0x18] sm:$0xff]
    %v615 = vld [vmem:[#allocation2 + $0x20] sm:$0xff]
    %v616 = vld [vmem:[#allocation2 + $0x28] sm:$0xff]
    %v617 = vld [vmem:[#allocation2 + $0x30] sm:$0xff]
    %v618 = vld [vmem:[#allocation2 + $0x38] sm:$0xff]
    %v619 = vld [vmem:[#allocation2 + $0x40] sm:$0xff]
    %v620 = vld [vmem:[#allocation2 + $0x48] sm:$0xff]
    %v621 = vld [vmem:[#allocation2 + $0x50] sm:$0xff]
    %v622 = vld [vmem:[#allocation2 + $0x58] sm:$0xff]
    %v623 = vld [vmem:[#allocation2 + $0x60] sm:$0xff]
    %v624 = vld [vmem:[#allocation2 + $0x68] sm:$0xff]
    %v625 = vld [vmem:[#allocation2 + $0x70] sm:$0xff]
    %v626 = vld [vmem:[#allocation2 + $0x78] sm:$0xff]
    %s627 = scalar_lea.vmem [#allocation4], 32
    %v628 = vld [vmem:[%s627] sm:$0xff]
    %v629 = vlaneseq
    %v630 = vshrl.u32 %v629, 7
    %v631 = vsub.s32 0, %v630
    %v632 = vrot.slane %v628, %v631
    %633 = vmatprep.subr.mxu0 0.0
    %634 = vmatpush1.msra.mxu0 %v611
    %635 = vmatprep.subr.mxu0 0.0
    %636 = vmatpush1.msra.mxu0 %v612
    %637 = vmatprep.subr.mxu0 0.0
    %638 = vmatpush1.msra.mxu0 %v613
    %639 = vmatprep.subr.mxu0 0.0
    %640 = vmatpush1.msra.mxu0 %v614
    %641 = vmatprep.subr.mxu0 0.0
    %642 = vmatpush1.msra.mxu0 %v615
    %643 = vmatprep.subr.mxu0 0.0
    %644 = vmatpush1.msra.mxu0 %v616
    %645 = vmatprep.subr.mxu0 0.0
    %646 = vmatpush1.msra.mxu0 %v617
    %647 = vmatprep.subr.mxu0 0.0
    %648 = vmatpush1.msra.mxu0 %v618
    %649 = vmatprep.subr.mxu0 0.0
    %650 = vmatpush1.msra.mxu0 %v619
    %651 = vmatprep.subr.mxu0 0.0
    %652 = vmatpush1.msra.mxu0 %v620
    %653 = vmatprep.subr.mxu0 0.0
    %654 = vmatpush1.msra.mxu0 %v621
    %655 = vmatprep.subr.mxu0 0.0
    %656 = vmatpush1.msra.mxu0 %v622
    %657 = vmatprep.subr.mxu0 0.0
    %658 = vmatpush1.msra.mxu0 %v623
    %659 = vmatprep.subr.mxu0 0.0
    %660 = vmatpush1.msra.mxu0 %v624
    %661 = vmatprep.subr.mxu0 0.0
    %662 = vmatpush1.msra.mxu0 %v625
    %663 = vmatprep.subr.mxu0 0.0
    %664 = vmatpush1.msra.mxu0 %v626
    %665 = vmatprep.subr.mxu0 0.0
    %666 = vmatpush1.msra.mxu0 0.0
    %667 = vmatprep.subr.mxu0 0.0
    %668 = vmatpush1.msra.mxu0 0.0
    %669 = vmatprep.subr.mxu0 0.0
    %670 = vmatpush1.msra.mxu0 0.0
    %671 = vmatprep.subr.mxu0 0.0
    %672 = vmatpush1.msra.mxu0 0.0
    %673 = vmatprep.subr.mxu0 0.0
    %674 = vmatpush1.msra.mxu0 0.0
    %675 = vmatprep.subr.mxu0 0.0
    %676 = vmatpush1.msra.mxu0 0.0
    %677 = vmatprep.subr.mxu0 0.0
    %678 = vmatpush1.msra.mxu0 0.0
    %679 = vmatprep.subr.mxu0 0.0
    %680 = vmatpush1.msra.mxu0 0.0
    %681 = vmatprep.subr.mxu0 0.0
    %682 = vmatpush1.msra.mxu0 0.0
    %683 = vmatprep.subr.mxu0 0.0
    %684 = vmatpush1.msra.mxu0 0.0
    %685 = vmatprep.subr.mxu0 0.0
    %686 = vmatpush1.msra.mxu0 0.0
    %687 = vmatprep.subr.mxu0 0.0
    %688 = vmatpush1.msra.mxu0 0.0
    %689 = vmatprep.subr.mxu0 0.0
    %690 = vmatpush1.msra.mxu0 0.0
    %691 = vmatprep.subr.mxu0 0.0
    %692 = vmatpush1.msra.mxu0 0.0
    %693 = vmatprep.subr.mxu0 0.0
    %694 = vmatpush1.msra.mxu0 0.0
    %695 = vmatprep.subr.mxu0 0.0
    %696 = vmatpush1.msra.mxu0 0.0
    %697 = vmatprep.mubr.f32.mxu0 0.0
    %698 = vmatmul.mubr.f32.gmra.mrb[0].mxu0 %v596
    %v699 = vpop.f32.mrb[0].mxu0
    %v700 = vadd.f32 %v632, %v699
    %v701 = vpop.f32.mrb[0].mxu0
    %702 = vdwg.mxu0
    %v703 = vlaneseq
    %v704 = vand.u32 %v703, 127
    %vm705 = vcmp.ge.s32.totalorder %v704, 64
    %vm706 = vcmp.lt.s32.totalorder %v704, 67
    %vm707 = vmand %vm705, %vm706
    %v708 = vsel %vm707, 1, 0
    %vm709 = vcmp.eq.s32.totalorder %v708, 1
    %v710 = vsel %vm709, %v37, 0.0
    %v711 = vmul.f32 %v700, 0.5
    %v712 = vmul.f32 %v711, 1.442695
    %v713 = vpow.pop %v712
    %v714 = vmul.f32 %v710, %v713
    %715 = vrot.lane.b32.xlu0 %v714, 64
    %v716 = vpop.permute.xlu0 %715
    %v717 = vadd.f32 %v716, %v700
    %s718 = sshll.u32 %s38, 4
    %719 = dma.done %s43, %s718
    %s720 = scalar_lea.hbm %s1, 12288
    // Predicated region
    $region38: #{autoencoder_forward.1} parent=1 // pred_check
      _
    $region39: #{autoencoder_forward.1} parent=1 // pred_check_branch
      %722 = sbr.rel target = $region41
    $region40: #{autoencoder_forward.1} parent=1 // pred_region
      %723 = sst [smem:[#allocation8]] [#allocation21]
      %724 = sst [smem:[#allocation9]] [#allocation20]
    $region41: #{autoencoder_forward.1} parent=1 // pred_fallthru
      _
    %726 = shalt.err (0)
    %s728 = sshll.u32 [#allocation2], 4
    %s729 = int_to_ptr.vmem [resolvable:$true] %s728
    %731 = dma.hbm_to_vmem [thread:$0]  %s720, 2048, %s729, [#allocation3]
    %v732 = vld [vmem:[%s42] sm:$0xff]
    %v733 = vld [vmem:[%s42 + $0x8] sm:$0xff]
    %v734 = vld [vmem:[%s42 + $0x10] sm:$0xff]
    %v735 = vld [vmem:[%s42 + $0x18] sm:$0xff]
    %v736 = vld [vmem:[%s42 + $0x20] sm:$0xff]
    %v737 = vld [vmem:[%s42 + $0x28] sm:$0xff]
    %v738 = vld [vmem:[%s42 + $0x30] sm:$0xff]
    %v739 = vld [vmem:[%s42 + $0x38] sm:$0xff]
    %v740 = vld [vmem:[%s42 + $0x40] sm:$0xff]
    %v741 = vld [vmem:[%s42 + $0x48] sm:$0xff]
    %v742 = vld [vmem:[%s42 + $0x50] sm:$0xff]
    %v743 = vld [vmem:[%s42 + $0x58] sm:$0xff]
    %v744 = vld [vmem:[%s42 + $0x60] sm:$0xff]
    %v745 = vld [vmem:[%s42 + $0x68] sm:$0xff]
    %v746 = vld [vmem:[%s42 + $0x70] sm:$0xff]
    %v747 = vld [vmem:[%s42 + $0x78] sm:$0xff]
    %748 = vmatprep.subr.mxu0 0.0
    %749 = vmatpush1.msra.mxu0 %v732
    %750 = vmatprep.subr.mxu0 0.0
    %751 = vmatpush1.msra.mxu0 %v733
    %752 = vmatprep.subr.mxu0 0.0
    %753 = vmatpush1.msra.mxu0 %v734
    %754 = vmatprep.subr.mxu0 0.0
    %755 = vmatpush1.msra.mxu0 %v735
    %756 = vmatprep.subr.mxu0 0.0
    %757 = vmatpush1.msra.mxu0 %v736
    %758 = vmatprep.subr.mxu0 0.0
    %759 = vmatpush1.msra.mxu0 %v737
    %760 = vmatprep.subr.mxu0 0.0
    %761 = vmatpush1.msra.mxu0 %v738
    %762 = vmatprep.subr.mxu0 0.0
    %763 = vmatpush1.msra.mxu0 %v739
    %764 = vmatprep.subr.mxu0 0.0
    %765 = vmatpush1.msra.mxu0 %v740
    %766 = vmatprep.subr.mxu0 0.0
    %767 = vmatpush1.msra.mxu0 %v741
    %768 = vmatprep.subr.mxu0 0.0
    %769 = vmatpush1.msra.mxu0 %v742
    %770 = vmatprep.subr.mxu0 0.0
    %771 = vmatpush1.msra.mxu0 %v743
    %772 = vmatprep.subr.mxu0 0.0
    %773 = vmatpush1.msra.mxu0 %v744
    %774 = vmatprep.subr.mxu0 0.0
    %775 = vmatpush1.msra.mxu0 %v745
    %776 = vmatprep.subr.mxu0 0.0
    %777 = vmatpush1.msra.mxu0 %v746
    %778 = vmatprep.subr.mxu0 0.0
    %779 = vmatpush1.msra.mxu0 %v747
    %780 = vmatprep.subr.mxu0 0.0
    %781 = vmatpush1.msra.mxu0 0.0
    %782 = vmatprep.subr.mxu0 0.0
    %783 = vmatpush1.msra.mxu0 0.0
    %784 = vmatprep.subr.mxu0 0.0
    %785 = vmatpush1.msra.mxu0 0.0
    %786 = vmatprep.subr.mxu0 0.0
    %787 = vmatpush1.msra.mxu0 0.0
    %788 = vmatprep.subr.mxu0 0.0
    %789 = vmatpush1.msra.mxu0 0.0
    %790 = vmatprep.subr.mxu0 0.0
    %791 = vmatpush1.msra.mxu0 0.0
    %792 = vmatprep.subr.mxu0 0.0
    %793 = vmatpush1.msra.mxu0 0.0
    %794 = vmatprep.subr.mxu0 0.0
    %795 = vmatpush1.msra.mxu0 0.0
    %796 = vmatprep.subr.mxu0 0.0
    %797 = vmatpush1.msra.mxu0 0.0
    %798 = vmatprep.subr.mxu0 0.0
    %799 = vmatpush1.msra.mxu0 0.0
    %800 = vmatprep.subr.mxu0 0.0
    %801 = vmatpush1.msra.mxu0 0.0
    %802 = vmatprep.subr.mxu0 0.0
    %803 = vmatpush1.msra.mxu0 0.0
    %804 = vmatprep.subr.mxu0 0.0
    %805 = vmatpush1.msra.mxu0 0.0
    %806 = vmatprep.subr.mxu0 0.0
    %807 = vmatpush1.msra.mxu0 0.0
    %808 = vmatprep.subr.mxu0 0.0
    %809 = vmatpush1.msra.mxu0 0.0
    %810 = vmatprep.subr.mxu0 0.0
    %811 = vmatpush1.msra.mxu0 0.0
    %812 = vmatprep.mubr.f32.mxu0 0.0
    %813 = vmatmul.mubr.f32.gmra.mrb[0].mxu0 %v717
    %v814 = vpop.f32.mrb[0].mxu0
    %v815 = vadd.f32 0.0, %v814
    %v816 = vpop.f32.mrb[0].mxu0
    %817 = vdwg.mxu0
    %s818 = scalar_lea.vmem [#allocation4], 40
    %v819 = vld [vmem:[%s818] sm:$0xff]
    %v820 = vrot.slane %v815, 4
    %v821 = vadd.f32 %v815, %v820
    %v822 = vrot.slane %v821, 2
    %v823 = vadd.f32 %v821, %v822
    %v824 = vrot.slane %v823, 1
    %v825 = vadd.f32 %v823, %v824
    %v826 = vmul.f32 %v825, %v148
    %v827 = vmul.f32 %v815, %v815
    %v828 = vrot.slane %v827, 4
    %v829 = vadd.f32 %v827, %v828
    %v830 = vrot.slane %v829, 2
    %v831 = vadd.f32 %v829, %v830
    %v832 = vrot.slane %v831, 1
    %v833 = vadd.f32 %v831, %v832
    %v834 = vmul.f32 %v833, %v148
    %v835 = vmul.f32 %v826, %v826
    %v836 = vsub.f32 %v834, %v835
    %v837 = vmax.f32 %v836, 0.0
    %v838 = vadd.f32 %v837, 1e-05
    %v839 = vrsqrt.pop %v838
    %v840 = vmul.f32 %v819, %v839
    %v841 = vmul.f32 %v826, %v840
    %v843 = vrot.slane %v841, 7
    %v845 = vsub.f32 %v819, %v843
    %v846 = vlaneseq
    %v847 = vshrl.u32 %v846, 7
    %v848 = vsub.s32 0, %v847
    %v849 = vrot.slane %v840, %v848
    %v850 = vmul.f32 %v815, %v849
    %v851 = vlaneseq
    %v852 = vshrl.u32 %v851, 7
    %v853 = vsub.s32 1, %v852
    %v854 = vrot.slane %v845, %v853
    %v855 = vadd.f32 %v850, %v854
    %v856 = vmax.f32 %v855, 0.0
    %s857 = sshll.u32 %s38, 4
    %858 = dma.done [#allocation3], %s857
    %s859 = scalar_lea.hbm %s1, 14336
    // Predicated region
    $region42: #{autoencoder_forward.1} parent=1 // pred_check
      _
    $region43: #{autoencoder_forward.1} parent=1 // pred_check_branch
      %861 = sbr.rel target = $region45
    $region44: #{autoencoder_forward.1} parent=1 // pred_region
      %862 = sst [smem:[#allocation8]] [#allocation23]
      %863 = sst [smem:[#allocation9]] [#allocation22]
    $region45: #{autoencoder_forward.1} parent=1 // pred_fallthru
      _
    %865 = shalt.err (0)
    %s867 = sshll.u32 %s42, 4
    %s868 = int_to_ptr.vmem [resolvable:$true] %s867
    %870 = dma.hbm_to_vmem [thread:$0]  %s859, 2048, %s868, %s43
    %v871 = vld [vmem:[#allocation2] sm:$0xff]
    %v872 = vld [vmem:[#allocation2 + $0x8] sm:$0xff]
    %v873 = vld [vmem:[#allocation2 + $0x10] sm:$0xff]
    %v874 = vld [vmem:[#allocation2 + $0x18] sm:$0xff]
    %v875 = vld [vmem:[#allocation2 + $0x20] sm:$0xff]
    %v876 = vld [vmem:[#allocation2 + $0x28] sm:$0xff]
    %v877 = vld [vmem:[#allocation2 + $0x30] sm:$0xff]
    %v878 = vld [vmem:[#allocation2 + $0x38] sm:$0xff]
    %v879 = vld [vmem:[#allocation2 + $0x40] sm:$0xff]
    %v880 = vld [vmem:[#allocation2 + $0x48] sm:$0xff]
    %v881 = vld [vmem:[#allocation2 + $0x50] sm:$0xff]
    %v882 = vld [vmem:[#allocation2 + $0x58] sm:$0xff]
    %v883 = vld [vmem:[#allocation2 + $0x60] sm:$0xff]
    %v884 = vld [vmem:[#allocation2 + $0x68] sm:$0xff]
    %v885 = vld [vmem:[#allocation2 + $0x70] sm:$0xff]
    %v886 = vld [vmem:[#allocation2 + $0x78] sm:$0xff]
    %887 = vmatprep.subr.mxu0 0.0
    %888 = vmatpush1.msra.mxu0 %v871
    %889 = vmatprep.subr.mxu0 0.0
    %890 = vmatpush1.msra.mxu0 %v872
    %891 = vmatprep.subr.mxu0 0.0
    %892 = vmatpush1.msra.mxu0 %v873
    %893 = vmatprep.subr.mxu0 0.0
    %894 = vmatpush1.msra.mxu0 %v874
    %895 = vmatprep.subr.mxu0 0.0
    %896 = vmatpush1.msra.mxu0 %v875
    %897 = vmatprep.subr.mxu0 0.0
    %898 = vmatpush1.msra.mxu0 %v876
    %899 = vmatprep.subr.mxu0 0.0
    %900 = vmatpush1.msra.mxu0 %v877
    %901 = vmatprep.subr.mxu0 0.0
    %902 = vmatpush1.msra.mxu0 %v878
    %903 = vmatprep.subr.mxu0 0.0
    %904 = vmatpush1.msra.mxu0 %v879
    %905 = vmatprep.subr.mxu0 0.0
    %906 = vmatpush1.msra.mxu0 %v880
    %907 = vmatprep.subr.mxu0 0.0
    %908 = vmatpush1.msra.mxu0 %v881
    %909 = vmatprep.subr.mxu0 0.0
    %910 = vmatpush1.msra.mxu0 %v882
    %911 = vmatprep.subr.mxu0 0.0
    %912 = vmatpush1.msra.mxu0 %v883
    %913 = vmatprep.subr.mxu0 0.0
    %914 = vmatpush1.msra.mxu0 %v884
    %915 = vmatprep.subr.mxu0 0.0
    %916 = vmatpush1.msra.mxu0 %v885
    %917 = vmatprep.subr.mxu0 0.0
    %918 = vmatpush1.msra.mxu0 %v886
    %919 = vmatprep.subr.mxu0 0.0
    %920 = vmatpush1.msra.mxu0 0.0
    %921 = vmatprep.subr.mxu0 0.0
    %922 = vmatpush1.msra.mxu0 0.0
    %923 = vmatprep.subr.mxu0 0.0
    %924 = vmatpush1.msra.mxu0 0.0
    %925 = vmatprep.subr.mxu0 0.0
    %926 = vmatpush1.msra.mxu0 0.0
    %927 = vmatprep.subr.mxu0 0.0
    %928 = vmatpush1.msra.mxu0 0.0
    %929 = vmatprep.subr.mxu0 0.0
    %930 = vmatpush1.msra.mxu0 0.0
    %931 = vmatprep.subr.mxu0 0.0
    %932 = vmatpush1.msra.mxu0 0.0
    %933 = vmatprep.subr.mxu0 0.0
    %934 = vmatpush1.msra.mxu0 0.0
    %935 = vmatprep.subr.mxu0 0.0
    %936 = vmatpush1.msra.mxu0 0.0
    %937 = vmatprep.subr.mxu0 0.0
    %938 = vmatpush1.msra.mxu0 0.0
    %939 = vmatprep.subr.mxu0 0.0
    %940 = vmatpush1.msra.mxu0 0.0
    %941 = vmatprep.subr.mxu0 0.0
    %942 = vmatpush1.msra.mxu0 0.0
    %943 = vmatprep.subr.mxu0 0.0
    %944 = vmatpush1.msra.mxu0 0.0
    %945 = vmatprep.subr.mxu0 0.0
    %946 = vmatpush1.msra.mxu0 0.0
    %947 = vmatprep.subr.mxu0 0.0
    %948 = vmatpush1.msra.mxu0 0.0
    %949 = vmatprep.subr.mxu0 0.0
    %950 = vmatpush1.msra.mxu0 0.0
    %951 = vmatprep.mubr.f32.mxu0 0.0
    %952 = vmatmul.mubr.f32.gmra.mrb[0].mxu0 %v856
    %v953 = vpop.f32.mrb[0].mxu0
    %v954 = vadd.f32 0.0, %v953
    %v955 = vpop.f32.mrb[0].mxu0
    %956 = vdwg.mxu0
    %s957 = scalar_lea.vmem [#allocation4], 48
    %v958 = vld [vmem:[%s957] sm:$0xff]
    %v959 = vrot.slane %v954, 4
    %v960 = vadd.f32 %v954, %v959
    %v961 = vrot.slane %v960, 2
    %v962 = vadd.f32 %v960, %v961
    %v963 = vrot.slane %v962, 1
    %v964 = vadd.f32 %v962, %v963
    %v965 = vmul.f32 %v964, %v148
    %v966 = vmul.f32 %v954, %v954
    %v967 = vrot.slane %v966, 4
    %v968 = vadd.f32 %v966, %v967
    %v969 = vrot.slane %v968, 2
    %v970 = vadd.f32 %v968, %v969
    %v971 = vrot.slane %v970, 1
    %v972 = vadd.f32 %v970, %v971
    %v973 = vmul.f32 %v972, %v148
    %v974 = vmul.f32 %v965, %v965
    %v975 = vsub.f32 %v973, %v974
    %v976 = vmax.f32 %v975, 0.0
    %v977 = vadd.f32 %v976, 1e-05
    %v978 = vrsqrt.pop %v977
    %v979 = vmul.f32 %v958, %v978
    %v980 = vmul.f32 %v965, %v979
    %v982 = vrot.slane %v980, 7
    %v984 = vsub.f32 %v958, %v982
    %v985 = vlaneseq
    %v986 = vshrl.u32 %v985, 7
    %v987 = vsub.s32 0, %v986
    %v988 = vrot.slane %v979, %v987
    %v989 = vmul.f32 %v954, %v988
    %v990 = vlaneseq
    %v991 = vshrl.u32 %v990, 7
    %v992 = vsub.s32 1, %v991
    %v993 = vrot.slane %v984, %v992
    %v994 = vadd.f32 %v989, %v993
    %v995 = vmax.f32 %v994, 0.0
    %s996 = sshll.u32 %s38, 4
    %997 = dma.done %s43, %s996
    %s998 = scalar_lea.hbm %s1, 16384
    // Predicated region
    $region46: #{autoencoder_forward.1} parent=1 // pred_check
      _
    $region47: #{autoencoder_forward.1} parent=1 // pred_check_branch
      %1000 = sbr.rel target = $region49
    $region48: #{autoencoder_forward.1} parent=1 // pred_region
      %1001 = sst [smem:[#allocation8]] [#allocation25]
      %1002 = sst [smem:[#allocation9]] [#allocation24]
    $region49: #{autoencoder_forward.1} parent=1 // pred_fallthru
      _
    %1004 = shalt.err (0)
    %s1006 = sshll.u32 [#allocation2], 4
    %s1007 = int_to_ptr.vmem [resolvable:$true] %s1006
    %1009 = dma.hbm_to_vmem [thread:$0]  %s998, 2048, %s1007, [#allocation3]
    %v1010 = vld [vmem:[%s42] sm:$0xff]
    %v1011 = vld [vmem:[%s42 + $0x8] sm:$0xff]
    %v1012 = vld [vmem:[%s42 + $0x10] sm:$0xff]
    %v1013 = vld [vmem:[%s42 + $0x18] sm:$0xff]
    %v1014 = vld [vmem:[%s42 + $0x20] sm:$0xff]
    %v1015 = vld [vmem:[%s42 + $0x28] sm:$0xff]
    %v1016 = vld [vmem:[%s42 + $0x30] sm:$0xff]
    %v1017 = vld [vmem:[%s42 + $0x38] sm:$0xff]
    %v1018 = vld [vmem:[%s42 + $0x40] sm:$0xff]
    %v1019 = vld [vmem:[%s42 + $0x48] sm:$0xff]
    %v1020 = vld [vmem:[%s42 + $0x50] sm:$0xff]
    %v1021 = vld [vmem:[%s42 + $0x58] sm:$0xff]
    %v1022 = vld [vmem:[%s42 + $0x60] sm:$0xff]
    %v1023 = vld [vmem:[%s42 + $0x68] sm:$0xff]
    %v1024 = vld [vmem:[%s42 + $0x70] sm:$0xff]
    %v1025 = vld [vmem:[%s42 + $0x78] sm:$0xff]
    %1026 = vmatprep.subr.mxu0 0.0
    %1027 = vmatpush1.msra.mxu0 %v1010
    %1028 = vmatprep.subr.mxu0 0.0
    %1029 = vmatpush1.msra.mxu0 %v1011
    %1030 = vmatprep.subr.mxu0 0.0
    %1031 = vmatpush1.msra.mxu0 %v1012
    %1032 = vmatprep.subr.mxu0 0.0
    %1033 = vmatpush1.msra.mxu0 %v1013
    %1034 = vmatprep.subr.mxu0 0.0
    %1035 = vmatpush1.msra.mxu0 %v1014
    %1036 = vmatprep.subr.mxu0 0.0
    %1037 = vmatpush1.msra.mxu0 %v1015
    %1038 = vmatprep.subr.mxu0 0.0
    %1039 = vmatpush1.msra.mxu0 %v1016
    %1040 = vmatprep.subr.mxu0 0.0
    %1041 = vmatpush1.msra.mxu0 %v1017
    %1042 = vmatprep.subr.mxu0 0.0
    %1043 = vmatpush1.msra.mxu0 %v1018
    %1044 = vmatprep.subr.mxu0 0.0
    %1045 = vmatpush1.msra.mxu0 %v1019
    %1046 = vmatprep.subr.mxu0 0.0
    %1047 = vmatpush1.msra.mxu0 %v1020
    %1048 = vmatprep.subr.mxu0 0.0
    %1049 = vmatpush1.msra.mxu0 %v1021
    %1050 = vmatprep.subr.mxu0 0.0
    %1051 = vmatpush1.msra.mxu0 %v1022
    %1052 = vmatprep.subr.mxu0 0.0
    %1053 = vmatpush1.msra.mxu0 %v1023
    %1054 = vmatprep.subr.mxu0 0.0
    %1055 = vmatpush1.msra.mxu0 %v1024
    %1056 = vmatprep.subr.mxu0 0.0
    %1057 = vmatpush1.msra.mxu0 %v1025
    %1058 = vmatprep.subr.mxu0 0.0
    %1059 = vmatpush1.msra.mxu0 0.0
    %1060 = vmatprep.subr.mxu0 0.0
    %1061 = vmatpush1.msra.mxu0 0.0
    %1062 = vmatprep.subr.mxu0 0.0
    %1063 = vmatpush1.msra.mxu0 0.0
    %1064 = vmatprep.subr.mxu0 0.0
    %1065 = vmatpush1.msra.mxu0 0.0
    %1066 = vmatprep.subr.mxu0 0.0
    %1067 = vmatpush1.msra.mxu0 0.0
    %1068 = vmatprep.subr.mxu0 0.0
    %1069 = vmatpush1.msra.mxu0 0.0
    %1070 = vmatprep.subr.mxu0 0.0
    %1071 = vmatpush1.msra.mxu0 0.0
    %1072 = vmatprep.subr.mxu0 0.0
    %1073 = vmatpush1.msra.mxu0 0.0
    %1074 = vmatprep.subr.mxu0 0.0
    %1075 = vmatpush1.msra.mxu0 0.0
    %1076 = vmatprep.subr.mxu0 0.0
    %1077 = vmatpush1.msra.mxu0 0.0
    %1078 = vmatprep.subr.mxu0 0.0
    %1079 = vmatpush1.msra.mxu0 0.0
    %1080 = vmatprep.subr.mxu0 0.0
    %1081 = vmatpush1.msra.mxu0 0.0
    %1082 = vmatprep.subr.mxu0 0.0
    %1083 = vmatpush1.msra.mxu0 0.0
    %1084 = vmatprep.subr.mxu0 0.0
    %1085 = vmatpush1.msra.mxu0 0.0
    %1086 = vmatprep.subr.mxu0 0.0
    %1087 = vmatpush1.msra.mxu0 0.0
    %1088 = vmatprep.subr.mxu0 0.0
    %1089 = vmatpush1.msra.mxu0 0.0
    %1090 = vmatprep.mubr.f32.mxu0 0.0
    %1091 = vmatmul.mubr.f32.gmra.mrb[0].mxu0 %v995
    %v1092 = vpop.f32.mrb[0].mxu0
    %v1093 = vadd.f32 0.0, %v1092
    %v1094 = vpop.f32.mrb[0].mxu0
    %1095 = vdwg.mxu0
    %s1096 = scalar_lea.vmem [#allocation4], 56
    %v1097 = vld [vmem:[%s1096] sm:$0xff]
    %v1098 = vrot.slane %v1093, 4
    %v1099 = vadd.f32 %v1093, %v1098
    %v1100 = vrot.slane %v1099, 2
    %v1101 = vadd.f32 %v1099, %v1100
    %v1102 = vrot.slane %v1101, 1
    %v1103 = vadd.f32 %v1101, %v1102
    %v1104 = vmul.f32 %v1103, %v148
    %v1105 = vmul.f32 %v1093, %v1093
    %v1106 = vrot.slane %v1105, 4
    %v1107 = vadd.f32 %v1105, %v1106
    %v1108 = vrot.slane %v1107, 2
    %v1109 = vadd.f32 %v1107, %v1108
    %v1110 = vrot.slane %v1109, 1
    %v1111 = vadd.f32 %v1109, %v1110
    %v1112 = vmul.f32 %v1111, %v148
    %v1113 = vmul.f32 %v1104, %v1104
    %v1114 = vsub.f32 %v1112, %v1113
    %v1115 = vmax.f32 %v1114, 0.0
    %v1116 = vadd.f32 %v1115, 1e-05
    %v1117 = vrsqrt.pop %v1116
    %v1118 = vmul.f32 %v1097, %v1117
    %v1119 = vmul.f32 %v1104, %v1118
    %v1121 = vrot.slane %v1119, 7
    %v1123 = vsub.f32 %v1097, %v1121
    %v1124 = vlaneseq
    %v1125 = vshrl.u32 %v1124, 7
    %v1126 = vsub.s32 0, %v1125
    %v1127 = vrot.slane %v1118, %v1126
    %v1128 = vmul.f32 %v1093, %v1127
    %v1129 = vlaneseq
    %v1130 = vshrl.u32 %v1129, 7
    %v1131 = vsub.s32 1, %v1130
    %v1132 = vrot.slane %v1123, %v1131
    %v1133 = vadd.f32 %v1128, %v1132
    %v1134 = vmax.f32 %v1133, 0.0
    %s1135 = sshll.u32 %s38, 4
    %1136 = dma.done [#allocation3], %s1135
    %s1137 = scalar_lea.hbm %s1, 18432
    // Predicated region
    $region50: #{autoencoder_forward.1} parent=1 // pred_check
      _
    $region51: #{autoencoder_forward.1} parent=1 // pred_check_branch
      %1139 = sbr.rel target = $region53
    $region52: #{autoencoder_forward.1} parent=1 // pred_region
      %1140 = sst [smem:[#allocation8]] [#allocation27]
      %1141 = sst [smem:[#allocation9]] [#allocation26]
    $region53: #{autoencoder_forward.1} parent=1 // pred_fallthru
      _
    %1143 = shalt.err (0)
    %s1145 = sshll.u32 %s42, 4
    %s1146 = int_to_ptr.vmem [resolvable:$true] %s1145
    %1148 = dma.hbm_to_vmem [thread:$0]  %s1137, 2048, %s1146, %s43
    %v1149 = vld [vmem:[#allocation2] sm:$0xff]
    %v1150 = vld [vmem:[#allocation2 + $0x8] sm:$0xff]
    %v1151 = vld [vmem:[#allocation2 + $0x10] sm:$0xff]
    %v1152 = vld [vmem:[#allocation2 + $0x18] sm:$0xff]
    %v1153 = vld [vmem:[#allocation2 + $0x20] sm:$0xff]
    %v1154 = vld [vmem:[#allocation2 + $0x28] sm:$0xff]
    %v1155 = vld [vmem:[#allocation2 + $0x30] sm:$0xff]
    %v1156 = vld [vmem:[#allocation2 + $0x38] sm:$0xff]
    %v1157 = vld [vmem:[#allocation2 + $0x40] sm:$0xff]
    %v1158 = vld [vmem:[#allocation2 + $0x48] sm:$0xff]
    %v1159 = vld [vmem:[#allocation2 + $0x50] sm:$0xff]
    %v1160 = vld [vmem:[#allocation2 + $0x58] sm:$0xff]
    %v1161 = vld [vmem:[#allocation2 + $0x60] sm:$0xff]
    %v1162 = vld [vmem:[#allocation2 + $0x68] sm:$0xff]
    %v1163 = vld [vmem:[#allocation2 + $0x70] sm:$0xff]
    %v1164 = vld [vmem:[#allocation2 + $0x78] sm:$0xff]
    %1165 = vmatprep.subr.mxu0 0.0
    %1166 = vmatpush1.msra.mxu0 %v1149
    %1167 = vmatprep.subr.mxu0 0.0
    %1168 = vmatpush1.msra.mxu0 %v1150
    %1169 = vmatprep.subr.mxu0 0.0
    %1170 = vmatpush1.msra.mxu0 %v1151
    %1171 = vmatprep.subr.mxu0 0.0
    %1172 = vmatpush1.msra.mxu0 %v1152
    %1173 = vmatprep.subr.mxu0 0.0
    %1174 = vmatpush1.msra.mxu0 %v1153
    %1175 = vmatprep.subr.mxu0 0.0
    %1176 = vmatpush1.msra.mxu0 %v1154
    %1177 = vmatprep.subr.mxu0 0.0
    %1178 = vmatpush1.msra.mxu0 %v1155
    %1179 = vmatprep.subr.mxu0 0.0
    %1180 = vmatpush1.msra.mxu0 %v1156
    %1181 = vmatprep.subr.mxu0 0.0
    %1182 = vmatpush1.msra.mxu0 %v1157
    %1183 = vmatprep.subr.mxu0 0.0
    %1184 = vmatpush1.msra.mxu0 %v1158
    %1185 = vmatprep.subr.mxu0 0.0
    %1186 = vmatpush1.msra.mxu0 %v1159
    %1187 = vmatprep.subr.mxu0 0.0
    %1188 = vmatpush1.msra.mxu0 %v1160
    %1189 = vmatprep.subr.mxu0 0.0
    %1190 = vmatpush1.msra.mxu0 %v1161
    %1191 = vmatprep.subr.mxu0 0.0
    %1192 = vmatpush1.msra.mxu0 %v1162
    %1193 = vmatprep.subr.mxu0 0.0
    %1194 = vmatpush1.msra.mxu0 %v1163
    %1195 = vmatprep.subr.mxu0 0.0
    %1196 = vmatpush1.msra.mxu0 %v1164
    %1197 = vmatprep.subr.mxu0 0.0
    %1198 = vmatpush1.msra.mxu0 0.0
    %1199 = vmatprep.subr.mxu0 0.0
    %1200 = vmatpush1.msra.mxu0 0.0
    %1201 = vmatprep.subr.mxu0 0.0
    %1202 = vmatpush1.msra.mxu0 0.0
    %1203 = vmatprep.subr.mxu0 0.0
    %1204 = vmatpush1.msra.mxu0 0.0
    %1205 = vmatprep.subr.mxu0 0.0
    %1206 = vmatpush1.msra.mxu0 0.0
    %1207 = vmatprep.subr.mxu0 0.0
    %1208 = vmatpush1.msra.mxu0 0.0
    %1209 = vmatprep.subr.mxu0 0.0
    %1210 = vmatpush1.msra.mxu0 0.0
    %1211 = vmatprep.subr.mxu0 0.0
    %1212 = vmatpush1.msra.mxu0 0.0
    %1213 = vmatprep.subr.mxu0 0.0
    %1214 = vmatpush1.msra.mxu0 0.0
    %1215 = vmatprep.subr.mxu0 0.0
    %1216 = vmatpush1.msra.mxu0 0.0
    %1217 = vmatprep.subr.mxu0 0.0
    %1218 = vmatpush1.msra.mxu0 0.0
    %1219 = vmatprep.subr.mxu0 0.0
    %1220 = vmatpush1.msra.mxu0 0.0
    %1221 = vmatprep.subr.mxu0 0.0
    %1222 = vmatpush1.msra.mxu0 0.0
    %1223 = vmatprep.subr.mxu0 0.0
    %1224 = vmatpush1.msra.mxu0 0.0
    %1225 = vmatprep.subr.mxu0 0.0
    %1226 = vmatpush1.msra.mxu0 0.0
    %1227 = vmatprep.subr.mxu0 0.0
    %1228 = vmatpush1.msra.mxu0 0.0
    %1229 = vmatprep.mubr.f32.mxu0 0.0
    %1230 = vmatmul.mubr.f32.gmra.mrb[0].mxu0 %v1134
    %v1231 = vpop.f32.mrb[0].mxu0
    %v1232 = vadd.f32 0.0, %v1231
    %v1233 = vpop.f32.mrb[0].mxu0
    %1234 = vdwg.mxu0
    %s1235 = scalar_lea.vmem [#allocation4], 64
    %v1236 = vld [vmem:[%s1235] sm:$0xff]
    %v1237 = vrot.slane %v1232, 4
    %v1238 = vadd.f32 %v1232, %v1237
    %v1239 = vrot.slane %v1238, 2
    %v1240 = vadd.f32 %v1238, %v1239
    %v1241 = vrot.slane %v1240, 1
    %v1242 = vadd.f32 %v1240, %v1241
    %v1243 = vmul.f32 %v1242, %v148
    %v1244 = vmul.f32 %v1232, %v1232
    %v1245 = vrot.slane %v1244, 4
    %v1246 = vadd.f32 %v1244, %v1245
    %v1247 = vrot.slane %v1246, 2
    %v1248 = vadd.f32 %v1246, %v1247
    %v1249 = vrot.slane %v1248, 1
    %v1250 = vadd.f32 %v1248, %v1249
    %v1251 = vmul.f32 %v1250, %v148
    %v1252 = vmul.f32 %v1243, %v1243
    %v1253 = vsub.f32 %v1251, %v1252
    %v1254 = vmax.f32 %v1253, 0.0
    %v1255 = vadd.f32 %v1254, 1e-05
    %v1256 = vrsqrt.pop %v1255
    %v1257 = vmul.f32 %v1236, %v1256
    %v1258 = vmul.f32 %v1243, %v1257
    %v1260 = vrot.slane %v1258, 7
    %v1262 = vsub.f32 %v1236, %v1260
    %v1263 = vlaneseq
    %v1264 = vshrl.u32 %v1263, 7
    %v1265 = vsub.s32 0, %v1264
    %v1266 = vrot.slane %v1257, %v1265
    %v1267 = vmul.f32 %v1232, %v1266
    %v1268 = vlaneseq
    %v1269 = vshrl.u32 %v1268, 7
    %v1270 = vsub.s32 1, %v1269
    %v1271 = vrot.slane %v1262, %v1270
    %v1272 = vadd.f32 %v1267, %v1271
    %v1273 = vmax.f32 %v1272, 0.0
    %s1274 = sshll.u32 %s38, 4
    %1275 = dma.done %s43, %s1274
    %v1276 = vld [vmem:[%s42] sm:$0xff]
    %v1277 = vld [vmem:[%s42 + $0x8] sm:$0xff]
    %v1278 = vld [vmem:[%s42 + $0x10] sm:$0xff]
    %v1279 = vld [vmem:[%s42 + $0x18] sm:$0xff]
    %v1280 = vld [vmem:[%s42 + $0x20] sm:$0xff]
    %v1281 = vld [vmem:[%s42 + $0x28] sm:$0xff]
    %v1282 = vld [vmem:[%s42 + $0x30] sm:$0xff]
    %v1283 = vld [vmem:[%s42 + $0x38] sm:$0xff]
    %v1284 = vld [vmem:[%s42 + $0x40] sm:$0xff]
    %v1285 = vld [vmem:[%s42 + $0x48] sm:$0xff]
    %v1286 = vld [vmem:[%s42 + $0x50] sm:$0xff]
    %v1287 = vld [vmem:[%s42 + $0x58] sm:$0xff]
    %v1288 = vld [vmem:[%s42 + $0x60] sm:$0xff]
    %v1289 = vld [vmem:[%s42 + $0x68] sm:$0xff]
    %v1290 = vld [vmem:[%s42 + $0x70] sm:$0xff]
    %v1291 = vld [vmem:[%s42 + $0x78] sm:$0xff]
    %1292 = vmatprep.subr.mxu0 0.0
    %1293 = vmatpush1.msra.mxu0 %v1276
    %1294 = vmatprep.subr.mxu0 0.0
    %1295 = vmatpush1.msra.mxu0 %v1277
    %1296 = vmatprep.subr.mxu0 0.0
    %1297 = vmatpush1.msra.mxu0 %v1278
    %1298 = vmatprep.subr.mxu0 0.0
    %1299 = vmatpush1.msra.mxu0 %v1279
    %1300 = vmatprep.subr.mxu0 0.0
    %1301 = vmatpush1.msra.mxu0 %v1280
    %1302 = vmatprep.subr.mxu0 0.0
    %1303 = vmatpush1.msra.mxu0 %v1281
    %1304 = vmatprep.subr.mxu0 0.0
    %1305 = vmatpush1.msra.mxu0 %v1282
    %1306 = vmatprep.subr.mxu0 0.0
    %1307 = vmatpush1.msra.mxu0 %v1283
    %1308 = vmatprep.subr.mxu0 0.0
    %1309 = vmatpush1.msra.mxu0 %v1284
    %1310 = vmatprep.subr.mxu0 0.0
    %1311 = vmatpush1.msra.mxu0 %v1285
    %1312 = vmatprep.subr.mxu0 0.0
    %1313 = vmatpush1.msra.mxu0 %v1286
    %1314 = vmatprep.subr.mxu0 0.0
    %1315 = vmatpush1.msra.mxu0 %v1287
    %1316 = vmatprep.subr.mxu0 0.0
    %1317 = vmatpush1.msra.mxu0 %v1288
    %1318 = vmatprep.subr.mxu0 0.0
    %1319 = vmatpush1.msra.mxu0 %v1289
    %1320 = vmatprep.subr.mxu0 0.0
    %1321 = vmatpush1.msra.mxu0 %v1290
    %1322 = vmatprep.subr.mxu0 0.0
    %1323 = vmatpush1.msra.mxu0 %v1291
    %1324 = vmatprep.subr.mxu0 0.0
    %1325 = vmatpush1.msra.mxu0 0.0
    %1326 = vmatprep.subr.mxu0 0.0
    %1327 = vmatpush1.msra.mxu0 0.0
    %1328 = vmatprep.subr.mxu0 0.0
    %1329 = vmatpush1.msra.mxu0 0.0
    %1330 = vmatprep.subr.mxu0 0.0
    %1331 = vmatpush1.msra.mxu0 0.0
    %1332 = vmatprep.subr.mxu0 0.0
    %1333 = vmatpush1.msra.mxu0 0.0
    %1334 = vmatprep.subr.mxu0 0.0
    %1335 = vmatpush1.msra.mxu0 0.0
    %1336 = vmatprep.subr.mxu0 0.0
    %1337 = vmatpush1.msra.mxu0 0.0
    %1338 = vmatprep.subr.mxu0 0.0
    %1339 = vmatpush1.msra.mxu0 0.0
    %1340 = vmatprep.subr.mxu0 0.0
    %1341 = vmatpush1.msra.mxu0 0.0
    %1342 = vmatprep.subr.mxu0 0.0
    %1343 = vmatpush1.msra.mxu0 0.0
    %1344 = vmatprep.subr.mxu0 0.0
    %1345 = vmatpush1.msra.mxu0 0.0
    %1346 = vmatprep.subr.mxu0 0.0
    %1347 = vmatpush1.msra.mxu0 0.0
    %1348 = vmatprep.subr.mxu0 0.0
    %1349 = vmatpush1.msra.mxu0 0.0
    %1350 = vmatprep.subr.mxu0 0.0
    %1351 = vmatpush1.msra.mxu0 0.0
    %1352 = vmatprep.subr.mxu0 0.0
    %1353 = vmatpush1.msra.mxu0 0.0
    %1354 = vmatprep.subr.mxu0 0.0
    %1355 = vmatpush1.msra.mxu0 0.0
    %1356 = vmatprep.mubr.f32.mxu0 0.0
    %1357 = vmatmul.mubr.f32.gmra.mrb[0].mxu0 %v1273
    %v1358 = vpop.f32.mrb[0].mxu0
    %v1359 = vadd.f32 0.0, %v1358
    %v1360 = vpop.f32.mrb[0].mxu0
    %1361 = vdwg.mxu0
    %s1362 = scalar_lea.vmem [#allocation4], 72
    %v1363 = vld [vmem:[%s1362] sm:$0xff]
    %v1364 = vrot.slane %v1359, 4
    %v1365 = vadd.f32 %v1359, %v1364
    %v1366 = vrot.slane %v1365, 2
    %v1367 = vadd.f32 %v1365, %v1366
    %v1368 = vrot.slane %v1367, 1
    %v1369 = vadd.f32 %v1367, %v1368
    %v1370 = vmul.f32 %v1369, %v148
    %v1371 = vmul.f32 %v1359, %v1359
    %v1372 = vrot.slane %v1371, 4
    %v1373 = vadd.f32 %v1371, %v1372
    %v1374 = vrot.slane %v1373, 2
    %v1375 = vadd.f32 %v1373, %v1374
    %v1376 = vrot.slane %v1375, 1
    %v1377 = vadd.f32 %v1375, %v1376
    %v1378 = vmul.f32 %v1377, %v148
    %v1379 = vmul.f32 %v1370, %v1370
    %v1380 = vsub.f32 %v1378, %v1379
    %v1381 = vmax.f32 %v1380, 0.0
    %v1382 = vadd.f32 %v1381, 1e-05
    %v1383 = vrsqrt.pop %v1382
    %v1384 = vmul.f32 %v1363, %v1383
    %v1385 = vmul.f32 %v1370, %v1384
    %v1387 = vrot.slane %v1385, 7
    %v1389 = vsub.f32 %v1363, %v1387
    %v1390 = vlaneseq
    %v1391 = vshrl.u32 %v1390, 7
    %v1392 = vsub.s32 0, %v1391
    %v1393 = vrot.slane %v1384, %v1392
    %v1394 = vmul.f32 %v1359, %v1393
    %v1395 = vlaneseq
    %v1396 = vshrl.u32 %v1395, 7
    %v1397 = vsub.s32 1, %v1396
    %v1398 = vrot.slane %v1389, %v1397
    %v1399 = vadd.f32 %v1394, %v1398
    %1400 = vst [vmem:[%s3] sm:$0xff] %v1399
    %1401 = vst [vmem:[%s3 + $0x8] sm:$0xff] %v700
    // Predicated region
    $region54: #{autoencoder_forward.1} parent=1 // pred_check
      _
    $region55: #{autoencoder_forward.1} parent=1 // pred_check_branch
      %1403 = sbr.rel (0) target = $region57
    $region56: #{autoencoder_forward.1} parent=1 // pred_region
      _
    $region57: #{autoencoder_forward.1} parent=1 // pred_fallthru
      _
    // Predicated region
    $region58: #{autoencoder_forward.1} parent=1 // pred_check
      _
    $region59: #{autoencoder_forward.1} parent=1 // pred_check_branch
      %1405 = sbr.rel (0) target = $region61
    $region60: #{autoencoder_forward.1} parent=1 // pred_region
      _
    $region61: #{autoencoder_forward.1} parent=1 // pred_fallthru
      _
    %1406 = vsyncpa [#allocation5], 1
  %1407 = vsyncmov [#allocation3]
  %s1408 = vpop.sfrf %1407
  %p1409 = scmp.eq.s32.totalorder %s1408, 0
  %p1410 = pneg %p1409
  %1412 = shalt.err (%p1410)
  %s1413 = scalar_lea.sflag [#allocation3], 1
  %1414 = vsyncmov %s1413
  %s1415 = vpop.sfrf %1414
  %p1416 = scmp.eq.s32.totalorder %s1415, 0
  %p1417 = pneg %p1416
  %1419 = shalt.err (%p1417)

</llo_original>
